<compile_context>
chip_gen: v6e
topology: v6e:2x2x1
jax: 0.10.0
libtpu: 0.0.40
codegen_flags: <defaults>
</compile_context>

<pallas_src>
import functools

import jax
import jax.numpy as jnp
from jax.experimental import pallas as pl
from jax.experimental.pallas import tpu as pltpu

POINT_DIM = 3          # raw xyz per point
POINT_DIM_PAD = 8      # feature axis padded to one sublane group
CONCEPT_DIM = 10
HIDDEN = 128
NEG_SLOPE = 0.01       # nn.LeakyReLU default


def _leaky(x):
    return jnp.where(x > 0, x, NEG_SLOPE * x)


# ---------------------------------------------------------------------------
# Kernel
# ---------------------------------------------------------------------------
def _ebm_kernel(x_ref, b1a_ref, bg1_ref,
                w1a_ref, w2_ref, b2_ref, w3_ref, b3_ref,
                wg1_ref, wg2_ref, bg2_ref, wg3_ref, bg3_ref,
                wg4_ref, bg4_ref, wg5_ref, bg5_ref, wg6_ref, bg6_ref,
                out_ref, acc_ref, *, n_valid, needs_mask, compute_dtype):
    j = pl.program_id(1)
    tb, _, tn = x_ref.shape
    hid = w2_ref.shape[0]

    def mm(a, w):
        # MXU matmul, f32 accumulation (bf16 inputs on the bf16 path).
        return jnp.dot(a.astype(compute_dtype), w.astype(compute_dtype),
                       preferred_element_type=jnp.float32)

    @pl.when(j == 0)
    def _():
        acc_ref[...] = jnp.zeros_like(acc_ref)

    # x block is feature-major (tb, 8, tn): points on lanes (dense layout).
    # Transpose only this small raw-point tile into the MXU-friendly standard
    # orientation (rows = points, lanes = channels).
    x_std = jnp.transpose(x_ref[...], (0, 2, 1))            # (tb, tn, 8)
    x2d = x_std.reshape(tb * tn, POINT_DIM_PAD)

    # Fused layer-1 + attention: one MXU pass; column `hid` is the attention
    # logit.  Per-batch bias (observer shift + concept columns) was
    # precomputed in the wrapper.
    z = mm(x2d, w1a_ref[...]).reshape(tb, tn, -1)           # (tb, tn, hid+128)
    b1a = b1a_ref[...]                                      # (tb, hid+128)
    h = _leaky(z[..., :hid] + b1a[:, None, :hid])           # (tb, tn, hid)
    att = jnp.tanh(z[..., hid:hid + 1] + b1a[:, None, hid:hid + 1])
    weight = 0.5 * att + 0.5                                # (tb, tn, 1)
    if needs_mask:
        # N was padded up to a multiple of the point chunk: zero out the
        # attention weight of pad points.
        pos = jax.lax.broadcasted_iota(jnp.int32, (tb, tn, 1), 1) + j * tn
        weight = jnp.where(pos < n_valid, weight, 0.0)

    # feature_net layers 2/3: standard (rows, 128) @ (128, 128) MXU passes.
    h = h.reshape(tb * tn, hid)
    h = _leaky(mm(h, w2_ref[...]) + b2_ref[...])
    h = _leaky(mm(h, w3_ref[...]) + b3_ref[...])            # (tb*tn, hid)

    # Attention-weighted partial sum over this point chunk.
    acc_ref[...] += jnp.sum(h.reshape(tb, tn, hid) * weight, axis=1)

    @pl.when(j == pl.num_programs(1) - 1)
    def _():
        s = acc_ref[...]                                    # (tb, hid)
        # g_net: concept columns of its first layer were folded into bg1_eff.
        g = _leaky(mm(s, wg1_ref[...]) + bg1_ref[...])
        g = _leaky(mm(g, wg2_ref[...]) + bg2_ref[...])
        g = _leaky(mm(g, wg3_ref[...]) + bg3_ref[...])
        g = _leaky(mm(g, wg4_ref[...]) + bg4_ref[...])
        g = _leaky(mm(g, wg5_ref[...]) + bg5_ref[...])
        out_ref[...] = 5.0 * (mm(g, wg6_ref[...]) + bg6_ref[...])


# ---------------------------------------------------------------------------
# Wrapper
# ---------------------------------------------------------------------------
_KERNEL_WEIGHT_ORDER = ("w1a", "w2", "b2", "w3", "b3", "wg1h", "wg2", "bg2",
                        "wg3", "bg3", "wg4", "bg4", "wg5", "bg5", "wg6", "bg6")
_MATMUL_WEIGHTS = frozenset(
    {"w1a", "w2", "w3", "wg1h", "wg2", "wg3", "wg4", "wg5", "wg6"})


def _pick_tiles(batch, n_points, tb, tn):
    # Point chunk: it is the lane dim of the x block, so it must be a multiple
    # of 128 unless it equals the full (padded) N.
    if tn is None:
        tn = 512
    if n_points <= tn:
        tn, n_pad = n_points, n_points
    else:
        tn = max(128, tn // 128 * 128)
        n_pad = -(-n_points // tn) * tn
    # Batch block: multiple of 8 unless it equals the padded batch.  Target
    # ~4K point-rows per grid step but keep >= 2 batch blocks for megacore.
    if tb is None:
        tb = (4096 // max(tn, 1)) // 8 * 8
        tb = max(8, min(64, tb))
        half = (batch // 2) // 8 * 8
        if half >= 8:
            tb = min(tb, half)
    if tb >= batch:
        tb = batch
    else:
        tb = max(8, tb // 8 * 8)
    b_pad = -(-batch // tb) * tb
    return tb, b_pad, tn, n_pad


def concept_ebm_forward(x, observer, concept, params, *, tb=None, tn=None,
                        compute_dtype=jnp.float32,
                        vmem_limit_bytes=48 * 1024 * 1024):
    """x: (B, N, 3), observer: (B, 2), concept: (B, 10) -> (B, 1)."""
    x = x.astype(jnp.float32)
    observer = observer.astype(jnp.float32)
    concept = concept.astype(jnp.float32)
    B, N, _ = x.shape
    hid = params["w2"].shape[0]
    fused = hid + HIDDEN      # layer-1 channels + 128-lane group with attn col

    tb, b_pad, tn, n_pad = _pick_tiles(B, N, tb, tn)
    needs_mask = n_pad != N

    # Per-batch bias precompute (always f32; observer shift folded by
    # linearity: (x - obs) @ W == x @ W - obs @ W).
    obs3 = jnp.pad(observer, ((0, 0), (0, POINT_DIM - 2)))            # (B, 3)
    with jax.default_matmul_precision("float32"):
        b1_eff = concept @ params["w1c"] - obs3 @ params["w1x"] + params["b1"]
        ba_eff = concept @ params["wac"] - obs3 @ params["wax"] + params["ba"]
        bg1_eff = concept @ params["wg1c"] + params["bg1"]
    bias1a = jnp.concatenate(
        [b1_eff, ba_eff, jnp.zeros((B, HIDDEN - 1), jnp.float32)], axis=-1)

    # Feature-major, zero-padded point tensor: (B_pad, 8, N_pad).
    xt = jnp.transpose(x, (0, 2, 1))
    xt = jnp.pad(xt, ((0, b_pad - B),
                      (0, POINT_DIM_PAD - POINT_DIM),
                      (0, n_pad - N)))
    bias1a = jnp.pad(bias1a, ((0, b_pad - B), (0, 0)))
    bg1_eff = jnp.pad(bg1_eff, ((0, b_pad - B), (0, 0)))

    # Fused [layer-1 | attention | zero-pad] weight, padded to 8 input rows.
    w1a = jnp.concatenate(
        [params["w1x"], params["wax"],
         jnp.zeros((POINT_DIM, HIDDEN - 1), jnp.float32)], axis=-1)
    w1a = jnp.pad(w1a, ((0, POINT_DIM_PAD - POINT_DIM), (0, 0)))      # (8, fused)

    tensors = dict(params)
    tensors["w1a"] = w1a
    weights = []
    for name in _KERNEL_WEIGHT_ORDER:
        w = tensors[name]
        if name in _MATMUL_WEIGHTS and compute_dtype != jnp.float32:
            w = w.astype(compute_dtype)        # halve the (one-time) weight DMA
        weights.append(w)

    def _full(shape):
        nd = len(shape)
        return pl.BlockSpec(shape, lambda i, j: (0,) * nd)

    grid = (b_pad // tb, n_pad // tn)
    in_specs = [
        pl.BlockSpec((tb, POINT_DIM_PAD, tn), lambda i, j: (i, 0, j)),   # points
        pl.BlockSpec((tb, fused), lambda i, j: (i, 0)),                  # L1/attn bias
        pl.BlockSpec((tb, hid), lambda i, j: (i, 0)),                    # g_net L1 bias
    ] + [_full(w.shape) for w in weights]

    kernel = functools.partial(_ebm_kernel, n_valid=N, needs_mask=needs_mask,
                               compute_dtype=compute_dtype)

    out = pl.pallas_call(
        kernel,
        out_shape=jax.ShapeDtypeStruct((b_pad, 1), jnp.float32),
        grid=grid,
        in_specs=in_specs,
        out_specs=pl.BlockSpec((tb, 1), lambda i, j: (i, 0)),
        scratch_shapes=[pltpu.VMEM((tb, hid), jnp.float32)],
        compiler_params=pltpu.CompilerParams(
            dimension_semantics=("parallel", "arbitrary"),
            vmem_limit_bytes=vmem_limit_bytes),
    )(xt, bias1a, bg1_eff, *weights)

    return out[:B]                                                     # (B, 1)


# ---------------------------------------------------------------------------
# Parameters (PyTorch nn.Linear-style init, weights stored (in, out)) and a
# pure-JAX reference of the original forward.
# ---------------------------------------------------------------------------
def init_params(key, hidden_dim=HIDDEN):
    def linear(key, fan_in, fan_out):
        kw, kb = jax.random.split(key)
        lim = 1.0 / jnp.sqrt(fan_in)
        w = jax.random.uniform(kw, (fan_in, fan_out), jnp.float32, -lim, lim)
        b = jax.random.uniform(kb, (1, fan_out), jnp.float32, -lim, lim)
        return w, b

    p = {}
    keys = jax.random.split(key, 10)
    w1, p["b1"] = linear(keys[0], POINT_DIM + CONCEPT_DIM, hidden_dim)
    p["w1x"], p["w1c"] = w1[:POINT_DIM], w1[POINT_DIM:]
    p["w2"], p["b2"] = linear(keys[1], hidden_dim, hidden_dim)
    p["w3"], p["b3"] = linear(keys[2], hidden_dim, hidden_dim)
    wa, p["ba"] = linear(keys[3], POINT_DIM + CONCEPT_DIM, 1)
    p["wax"], p["wac"] = wa[:POINT_DIM], wa[POINT_DIM:]
    wg1, p["bg1"] = linear(keys[4], hidden_dim + CONCEPT_DIM, hidden_dim)
    p["wg1h"], p["wg1c"] = wg1[:hidden_dim], wg1[hidden_dim:]
    p["wg2"], p["bg2"] = linear(keys[5], hidden_dim, hidden_dim)
    p["wg3"], p["bg3"] = linear(keys[6], hidden_dim, hidden_dim)
    p["wg4"], p["bg4"] = linear(keys[7], hidden_dim, hidden_dim)
    p["wg5"], p["bg5"] = linear(keys[8], hidden_dim, hidden_dim)
    p["wg6"], p["bg6"] = linear(keys[9], hidden_dim, 1)
    return p


def reference_forward(x, observer, concept, params):
    with jax.default_matmul_precision("float32"):
        x = x.at[..., :2].add(-observer[:, None, :])
        B, N, _ = x.shape
        cb = jnp.broadcast_to(concept[:, None, :], (B, N, CONCEPT_DIM))
        xc = jnp.concatenate([x, cb], axis=-1)
        w1 = jnp.concatenate([params["w1x"], params["w1c"]], axis=0)
        wa = jnp.concatenate([params["wax"], params["wac"]], axis=0)
        h = _leaky(xc @ w1 + params["b1"])
        h = _leaky(h @ params["w2"] + params["b2"])
        h = _leaky(h @ params["w3"] + params["b3"])
        attn = jnp.tanh(xc @ wa + params["ba"])
        s = jnp.sum(h * (0.5 * attn + 0.5), axis=1)                  # (B, hid)
        wg1 = jnp.concatenate([params["wg1h"], params["wg1c"]], axis=0)
        g_in = jnp.concatenate([s, concept], axis=-1)
        g = _leaky(g_in @ wg1 + params["bg1"])
        g = _leaky(g @ params["wg2"] + params["bg2"])
        g = _leaky(g @ params["wg3"] + params["bg3"])
        g = _leaky(g @ params["wg4"] + params["bg4"])
        g = _leaky(g @ params["wg5"] + params["bg5"])
        g = g @ params["wg6"] + params["bg6"]
        return 5.0 * g


if __name__ == "__main__":
    key = jax.random.PRNGKey(0)
    k_x, k_obs, k_c, k_p = jax.random.split(key, 4)
    params = init_params(k_p)

    # Small single-block case: grid = (1, 1).
    B, N = 2, 8
    x = jax.random.normal(k_x, (B, N, POINT_DIM), jnp.float32)
    observer = jax.random.normal(k_obs, (B, 2), jnp.float32)
    concept = jax.random.normal(k_c, (B, CONCEPT_DIM), jnp.float32)
    out = jax.block_until_ready(concept_ebm_forward(x, observer, concept, params))
    ref = reference_forward(x, observer, concept, params)
    assert out.shape == (B, 1), out.shape
    assert jnp.allclose(out, ref, atol=1e-3, rtol=1e-3), (out, ref)

    # Multi-block case: batch padding (20 -> 24), point chunking (200 -> 2x128
    # with 56 masked pad points), grid = (3, 2).
    B2, N2 = 20, 200
    k_x2, k_obs2, k_c2 = jax.random.split(jax.random.PRNGKey(1), 3)
    x2 = jax.random.normal(k_x2, (B2, N2, POINT_DIM), jnp.float32)
    observer2 = jax.random.normal(k_obs2, (B2, 2), jnp.float32)
    concept2 = jax.random.normal(k_c2, (B2, CONCEPT_DIM), jnp.float32)
    out2 = jax.block_until_ready(
        concept_ebm_forward(x2, observer2, concept2, params, tb=8, tn=128))
    ref2 = reference_forward(x2, observer2, concept2, params)
    assert out2.shape == (B2, 1), out2.shape
    assert jnp.allclose(out2, ref2, atol=5e-3, rtol=5e-3), \
        float(jnp.max(jnp.abs(out2 - ref2)))

    # bf16 matmul path (v5e/v6e/v7x MXU-native); numerics looser by design, so
    # just sanity-check shape and finiteness.
    out_bf = jax.block_until_ready(
        concept_ebm_forward(x2, observer2, concept2, params, tb=8, tn=128,
                            compute_dtype=jnp.bfloat16))
    assert out_bf.shape == (B2, 1), out_bf.shape
    assert bool(jnp.all(jnp.isfinite(out_bf)))

    print("KERNEL_OK")
</pallas_src>

<mosaic_0001>
module attributes {stable_mosaic.version = 11 : i64} {
  func.func @_ebm_kernel(%arg0: i32, %arg1: i32, %arg2: memref<2x8x8xf32, #tpu.memory_space<vmem>>, %arg3: memref<2x256xf32, #tpu.memory_space<vmem>>, %arg4: memref<2x128xf32, #tpu.memory_space<vmem>>, %arg5: memref<8x256xf32, #tpu.memory_space<vmem>>, %arg6: memref<128x128xf32, #tpu.memory_space<vmem>>, %arg7: memref<1x128xf32, #tpu.memory_space<vmem>>, %arg8: memref<128x128xf32, #tpu.memory_space<vmem>>, %arg9: memref<1x128xf32, #tpu.memory_space<vmem>>, %arg10: memref<128x128xf32, #tpu.memory_space<vmem>>, %arg11: memref<128x128xf32, #tpu.memory_space<vmem>>, %arg12: memref<1x128xf32, #tpu.memory_space<vmem>>, %arg13: memref<128x128xf32, #tpu.memory_space<vmem>>, %arg14: memref<1x128xf32, #tpu.memory_space<vmem>>, %arg15: memref<128x128xf32, #tpu.memory_space<vmem>>, %arg16: memref<1x128xf32, #tpu.memory_space<vmem>>, %arg17: memref<128x128xf32, #tpu.memory_space<vmem>>, %arg18: memref<1x128xf32, #tpu.memory_space<vmem>>, %arg19: memref<128x1xf32, #tpu.memory_space<vmem>>, %arg20: memref<1x1xf32, #tpu.memory_space<vmem>>, %arg21: memref<2x1xf32, #tpu.memory_space<vmem>>, %arg22: memref<2x128xf32, #tpu.memory_space<vmem>>) attributes {dimension_semantics = [#tpu.dimension_semantics<parallel>, #tpu.dimension_semantics<arbitrary>], iteration_bounds = array<i64: 1, 1>, scalar_prefetch = 0 : i64, scratch_operands = 1 : i64, tpu.core_type = #tpu.core_type<tc>, window_params = [{transform_indices = @transform_0, window_bounds = array<i64: 2, 8, 8>}, {transform_indices = @transform_1, window_bounds = array<i64: 2, 256>}, {transform_indices = @transform_2, window_bounds = array<i64: 2, 128>}, {pipeline_mode = #tpu.pipeline_mode<synchronous>, transform_indices = @transform_3, window_bounds = array<i64: 8, 256>}, {pipeline_mode = #tpu.pipeline_mode<synchronous>, transform_indices = @transform_4, window_bounds = array<i64: 128, 128>}, {pipeline_mode = #tpu.pipeline_mode<synchronous>, transform_indices = @transform_5, window_bounds = array<i64: 1, 128>}, {pipeline_mode = #tpu.pipeline_mode<synchronous>, transform_indices = @transform_6, window_bounds = array<i64: 128, 128>}, {pipeline_mode = #tpu.pipeline_mode<synchronous>, transform_indices = @transform_7, window_bounds = array<i64: 1, 128>}, {pipeline_mode = #tpu.pipeline_mode<synchronous>, transform_indices = @transform_8, window_bounds = array<i64: 128, 128>}, {pipeline_mode = #tpu.pipeline_mode<synchronous>, transform_indices = @transform_9, window_bounds = array<i64: 128, 128>}, {pipeline_mode = #tpu.pipeline_mode<synchronous>, transform_indices = @transform_10, window_bounds = array<i64: 1, 128>}, {pipeline_mode = #tpu.pipeline_mode<synchronous>, transform_indices = @transform_11, window_bounds = array<i64: 128, 128>}, {pipeline_mode = #tpu.pipeline_mode<synchronous>, transform_indices = @transform_12, window_bounds = array<i64: 1, 128>}, {pipeline_mode = #tpu.pipeline_mode<synchronous>, transform_indices = @transform_13, window_bounds = array<i64: 128, 128>}, {pipeline_mode = #tpu.pipeline_mode<synchronous>, transform_indices = @transform_14, window_bounds = array<i64: 1, 128>}, {pipeline_mode = #tpu.pipeline_mode<synchronous>, transform_indices = @transform_15, window_bounds = array<i64: 128, 128>}, {pipeline_mode = #tpu.pipeline_mode<synchronous>, transform_indices = @transform_16, window_bounds = array<i64: 1, 128>}, {pipeline_mode = #tpu.pipeline_mode<synchronous>, transform_indices = @transform_17, window_bounds = array<i64: 128, 1>}, {pipeline_mode = #tpu.pipeline_mode<synchronous>, transform_indices = @transform_18, window_bounds = array<i64: 1, 1>}, {transform_indices = @transform_19, window_bounds = array<i64: 2, 1>}]} {
    %c0_i32 = arith.constant 0 : i32
    %0 = arith.cmpi eq, %arg1, %c0_i32 : i32
    %1 = arith.extui %0 : i1 to i32
    %c0_i32_0 = arith.constant 0 : i32
    %2 = arith.cmpi ne, %1, %c0_i32_0 : i32
    scf.if %2 {
      %cst_32 = arith.constant 0.000000e+00 : f32
      %61 = vector.broadcast %cst_32 : f32 to vector<2x128xf32>
      %c0_33 = arith.constant 0 : index
      %c0_34 = arith.constant 0 : index
      %62 = vector.load %arg22[%c0_33, %c0_34] : memref<2x128xf32, #tpu.memory_space<vmem>>, vector<2x128xf32>
      tpu.vector_store %arg22[%c0_33, %c0_34], %61 {strides = array<i32>} : memref<2x128xf32, #tpu.memory_space<vmem>>, vector<2x128xf32>,
    } else {
    }
    %c0 = arith.constant 0 : index
    %c0_1 = arith.constant 0 : index
    %c0_2 = arith.constant 0 : index
    %3 = vector.load %arg2[%c0, %c0_1, %c0_2] : memref<2x8x8xf32, #tpu.memory_space<vmem>>, vector<2x8x8xf32>
    %4 = tpu.transpose %3, [0, 2, 1] : vector<2x8x8xf32> -> vector<2x8x8xf32>
    %5 = vector.shape_cast %4 : vector<2x8x8xf32> to vector<16x8xf32>
    %c0_3 = arith.constant 0 : index
    %c0_4 = arith.constant 0 : index
    %6 = vector.load %arg5[%c0_3, %c0_4] : memref<8x256xf32, #tpu.memory_space<vmem>>, vector<8x256xf32>
    %cst = arith.constant dense<0.000000e+00> : vector<16x256xf32>
    %7 = tpu.matmul %5, %6, %cst {dimension_numbers = #tpu.dot_dimension_numbers<[1], [0], [0], [1], [0, 0, 1, 1], [], []>} : vector<16x8xf32>, vector<8x256xf32>, vector<16x256xf32> -> vector<16x256xf32>
    %8 = vector.shape_cast %7 : vector<16x256xf32> to vector<2x8x256xf32>
    %c0_5 = arith.constant 0 : index
    %c0_6 = arith.constant 0 : index
    %9 = vector.load %arg3[%c0_5, %c0_6] : memref<2x256xf32, #tpu.memory_space<vmem>>, vector<2x256xf32>
    %10 = vector.extract_strided_slice %8 {offsets = [0, 0, 0], sizes = [2, 8, 128], strides = [1, 1, 1]} : vector<2x8x256xf32> to vector<2x8x128xf32>
    %11 = vector.extract_strided_slice %9 {offsets = [0, 0], sizes = [2, 128], strides = [1, 1]} : vector<2x256xf32> to vector<2x128xf32>
    %12 = vector.shape_cast %11 : vector<2x128xf32> to vector<2x1x128xf32>
    %13 = vector.broadcast %12 : vector<2x1x128xf32> to vector<2x8x128xf32>
    %14 = arith.addf %10, %13 : vector<2x8x128xf32>
    %cst_7 = arith.constant 0.000000e+00 : f32
    %15 = vector.broadcast %cst_7 : f32 to vector<2x8x128xf32>
    %16 = arith.cmpf ogt, %14, %15 : vector<2x8x128xf32>
    %cst_8 = arith.constant 0.00999999977 : f32
    %17 = vector.broadcast %cst_8 : f32 to vector<2x8x128xf32>
    %18 = arith.mulf %17, %14 : vector<2x8x128xf32>
    %19 = arith.select %16, %14, %18 : vector<2x8x128xi1>, vector<2x8x128xf32>
    %20 = vector.extract_strided_slice %8 {offsets = [0, 0, 128], sizes = [2, 8, 1], strides = [1, 1, 1]} : vector<2x8x256xf32> to vector<2x8x1xf32>
    %21 = vector.extract_strided_slice %9 {offsets = [0, 128], sizes = [2, 1], strides = [1, 1]} : vector<2x256xf32> to vector<2x1xf32>
    %22 = vector.shape_cast %21 : vector<2x1xf32> to vector<2x1x1xf32>
    %23 = vector.broadcast %22 : vector<2x1x1xf32> to vector<2x8x1xf32>
    %24 = arith.addf %20, %23 : vector<2x8x1xf32>
    %25 = math.tanh %24 : vector<2x8x1xf32>
    %cst_9 = arith.constant 5.000000e-01 : f32
    %26 = vector.broadcast %cst_9 : f32 to vector<2x8x1xf32>
    %27 = arith.mulf %26, %25 : vector<2x8x1xf32>
    %cst_10 = arith.constant 5.000000e-01 : f32
    %28 = vector.broadcast %cst_10 : f32 to vector<2x8x1xf32>
    %29 = arith.addf %27, %28 : vector<2x8x1xf32>
    %30 = vector.shape_cast %19 : vector<2x8x128xf32> to vector<16x128xf32>
    %c0_11 = arith.constant 0 : index
    %c0_12 = arith.constant 0 : index
    %31 = vector.load %arg6[%c0_11, %c0_12] : memref<128x128xf32, #tpu.memory_space<vmem>>, vector<128x128xf32>
    %cst_13 = arith.constant dense<0.000000e+00> : vector<16x128xf32>
    %32 = tpu.matmul %30, %31, %cst_13 {dimension_numbers = #tpu.dot_dimension_numbers<[1], [0], [0], [1], [0, 0, 1, 1], [], []>} : vector<16x128xf32>, vector<128x128xf32>, vector<16x128xf32> -> vector<16x128xf32>
    %c0_14 = arith.constant 0 : index
    %c0_15 = arith.constant 0 : index
    %33 = vector.load %arg7[%c0_14, %c0_15] : memref<1x128xf32, #tpu.memory_space<vmem>>, vector<1x128xf32>
    %34 = vector.broadcast %33 : vector<1x128xf32> to vector<16x128xf32>
    %35 = arith.addf %32, %34 : vector<16x128xf32>
    %cst_16 = arith.constant 0.000000e+00 : f32
    %36 = vector.broadcast %cst_16 : f32 to vector<16x128xf32>
    %37 = arith.cmpf ogt, %35, %36 : vector<16x128xf32>
    %cst_17 = arith.constant 0.00999999977 : f32
    %38 = vector.broadcast %cst_17 : f32 to vector<16x128xf32>
    %39 = arith.mulf %38, %35 : vector<16x128xf32>
    %40 = arith.select %37, %35, %39 : vector<16x128xi1>, vector<16x128xf32>
    %c0_18 = arith.constant 0 : index
    %c0_19 = arith.constant 0 : index
    %41 = vector.load %arg8[%c0_18, %c0_19] : memref<128x128xf32, #tpu.memory_space<vmem>>, vector<128x128xf32>
    %cst_20 = arith.constant dense<0.000000e+00> : vector<16x128xf32>
    %42 = tpu.matmul %40, %41, %cst_20 {dimension_numbers = #tpu.dot_dimension_numbers<[1], [0], [0], [1], [0, 0, 1, 1], [], []>} : vector<16x128xf32>, vector<128x128xf32>, vector<16x128xf32> -> vector<16x128xf32>
    %c0_21 = arith.constant 0 : index
    %c0_22 = arith.constant 0 : index
    %43 = vector.load %arg9[%c0_21, %c0_22] : memref<1x128xf32, #tpu.memory_space<vmem>>, vector<1x128xf32>
    %44 = vector.broadcast %43 : vector<1x128xf32> to vector<16x128xf32>
    %45 = arith.addf %42, %44 : vector<16x128xf32>
    %cst_23 = arith.constant 0.000000e+00 : f32
    %46 = vector.broadcast %cst_23 : f32 to vector<16x128xf32>
    %47 = arith.cmpf ogt, %45, %46 : vector<16x128xf32>
    %cst_24 = arith.constant 0.00999999977 : f32
    %48 = vector.broadcast %cst_24 : f32 to vector<16x128xf32>
    %49 = arith.mulf %48, %45 : vector<16x128xf32>
    %50 = arith.select %47, %45, %49 : vector<16x128xi1>, vector<16x128xf32>
    %c0_25 = arith.constant 0 : index
    %c0_26 = arith.constant 0 : index
    %51 = vector.load %arg22[%c0_25, %c0_26] : memref<2x128xf32, #tpu.memory_space<vmem>>, vector<2x128xf32>
    %52 = vector.shape_cast %50 : vector<16x128xf32> to vector<2x8x128xf32>
    %53 = vector.broadcast %29 : vector<2x8x1xf32> to vector<2x8x128xf32>
    %54 = arith.mulf %52, %53 : vector<2x8x128xf32>
    %cst_27 = arith.constant dense<0.000000e+00> : vector<2x128xf32>
    %55 = vector.multi_reduction <add>, %54, %cst_27 [1] : vector<2x8x128xf32> to vector<2x128xf32>
    %56 = arith.addf %51, %55 : vector<2x128xf32>
    %c0_28 = arith.constant 0 : index
    %c0_29 = arith.constant 0 : index
    %57 = vector.load %arg22[%c0_28, %c0_29] : memref<2x128xf32, #tpu.memory_space<vmem>>, vector<2x128xf32>
    tpu.vector_store %arg22[%c0_28, %c0_29], %56 {strides = array<i32>} : memref<2x128xf32, #tpu.memory_space<vmem>>, vector<2x128xf32>,
    %c0_i32_30 = arith.constant 0 : i32
    %58 = arith.cmpi eq, %arg1, %c0_i32_30 : i32
    %59 = arith.extui %58 : i1 to i32
    %c0_i32_31 = arith.constant 0 : i32
    %60 = arith.cmpi ne, %59, %c0_i32_31 : i32
    scf.if %60 {
      %c0_32 = arith.constant 0 : index
      %c0_33 = arith.constant 0 : index
      %61 = vector.load %arg22[%c0_32, %c0_33] : memref<2x128xf32, #tpu.memory_space<vmem>>, vector<2x128xf32>
      %c0_34 = arith.constant 0 : index
      %c0_35 = arith.constant 0 : index
      %62 = vector.load %arg10[%c0_34, %c0_35] : memref<128x128xf32, #tpu.memory_space<vmem>>, vector<128x128xf32>
      %cst_36 = arith.constant dense<0.000000e+00> : vector<2x128xf32>
      %63 = tpu.matmul %61, %62, %cst_36 {dimension_numbers = #tpu.dot_dimension_numbers<[1], [0], [0], [1], [0, 0, 1, 1], [], []>} : vector<2x128xf32>, vector<128x128xf32>, vector<2x128xf32> -> vector<2x128xf32>
      %c0_37 = arith.constant 0 : index
      %c0_38 = arith.constant 0 : index
      %64 = vector.load %arg4[%c0_37, %c0_38] : memref<2x128xf32, #tpu.memory_space<vmem>>, vector<2x128xf32>
      %65 = arith.addf %63, %64 : vector<2x128xf32>
      %cst_39 = arith.constant 0.000000e+00 : f32
      %66 = vector.broadcast %cst_39 : f32 to vector<2x128xf32>
      %67 = arith.cmpf ogt, %65, %66 : vector<2x128xf32>
      %cst_40 = arith.constant 0.00999999977 : f32
      %68 = vector.broadcast %cst_40 : f32 to vector<2x128xf32>
      %69 = arith.mulf %68, %65 : vector<2x128xf32>
      %70 = arith.select %67, %65, %69 : vector<2x128xi1>, vector<2x128xf32>
      %c0_41 = arith.constant 0 : index
      %c0_42 = arith.constant 0 : index
      %71 = vector.load %arg11[%c0_41, %c0_42] : memref<128x128xf32, #tpu.memory_space<vmem>>, vector<128x128xf32>
      %cst_43 = arith.constant dense<0.000000e+00> : vector<2x128xf32>
      %72 = tpu.matmul %70, %71, %cst_43 {dimension_numbers = #tpu.dot_dimension_numbers<[1], [0], [0], [1], [0, 0, 1, 1], [], []>} : vector<2x128xf32>, vector<128x128xf32>, vector<2x128xf32> -> vector<2x128xf32>
      %c0_44 = arith.constant 0 : index
      %c0_45 = arith.constant 0 : index
      %73 = vector.load %arg12[%c0_44, %c0_45] : memref<1x128xf32, #tpu.memory_space<vmem>>, vector<1x128xf32>
      %74 = vector.broadcast %73 : vector<1x128xf32> to vector<2x128xf32>
      %75 = arith.addf %72, %74 : vector<2x128xf32>
      %cst_46 = arith.constant 0.000000e+00 : f32
      %76 = vector.broadcast %cst_46 : f32 to vector<2x128xf32>
      %77 = arith.cmpf ogt, %75, %76 : vector<2x128xf32>
      %cst_47 = arith.constant 0.00999999977 : f32
      %78 = vector.broadcast %cst_47 : f32 to vector<2x128xf32>
      %79 = arith.mulf %78, %75 : vector<2x128xf32>
      %80 = arith.select %77, %75, %79 : vector<2x128xi1>, vector<2x128xf32>
      %c0_48 = arith.constant 0 : index
      %c0_49 = arith.constant 0 : index
      %81 = vector.load %arg13[%c0_48, %c0_49] : memref<128x128xf32, #tpu.memory_space<vmem>>, vector<128x128xf32>
      %cst_50 = arith.constant dense<0.000000e+00> : vector<2x128xf32>
      %82 = tpu.matmul %80, %81, %cst_50 {dimension_numbers = #tpu.dot_dimension_numbers<[1], [0], [0], [1], [0, 0, 1, 1], [], []>} : vector<2x128xf32>, vector<128x128xf32>, vector<2x128xf32> -> vector<2x128xf32>
      %c0_51 = arith.constant 0 : index
      %c0_52 = arith.constant 0 : index
      %83 = vector.load %arg14[%c0_51, %c0_52] : memref<1x128xf32, #tpu.memory_space<vmem>>, vector<1x128xf32>
      %84 = vector.broadcast %83 : vector<1x128xf32> to vector<2x128xf32>
      %85 = arith.addf %82, %84 : vector<2x128xf32>
      %cst_53 = arith.constant 0.000000e+00 : f32
      %86 = vector.broadcast %cst_53 : f32 to vector<2x128xf32>
      %87 = arith.cmpf ogt, %85, %86 : vector<2x128xf32>
      %cst_54 = arith.constant 0.00999999977 : f32
      %88 = vector.broadcast %cst_54 : f32 to vector<2x128xf32>
      %89 = arith.mulf %88, %85 : vector<2x128xf32>
      %90 = arith.select %87, %85, %89 : vector<2x128xi1>, vector<2x128xf32>
      %c0_55 = arith.constant 0 : index
      %c0_56 = arith.constant 0 : index
      %91 = vector.load %arg15[%c0_55, %c0_56] : memref<128x128xf32, #tpu.memory_space<vmem>>, vector<128x128xf32>
      %cst_57 = arith.constant dense<0.000000e+00> : vector<2x128xf32>
      %92 = tpu.matmul %90, %91, %cst_57 {dimension_numbers = #tpu.dot_dimension_numbers<[1], [0], [0], [1], [0, 0, 1, 1], [], []>} : vector<2x128xf32>, vector<128x128xf32>, vector<2x128xf32> -> vector<2x128xf32>
      %c0_58 = arith.constant 0 : index
      %c0_59 = arith.constant 0 : index
      %93 = vector.load %arg16[%c0_58, %c0_59] : memref<1x128xf32, #tpu.memory_space<vmem>>, vector<1x128xf32>
      %94 = vector.broadcast %93 : vector<1x128xf32> to vector<2x128xf32>
      %95 = arith.addf %92, %94 : vector<2x128xf32>
      %cst_60 = arith.constant 0.000000e+00 : f32
      %96 = vector.broadcast %cst_60 : f32 to vector<2x128xf32>
      %97 = arith.cmpf ogt, %95, %96 : vector<2x128xf32>
      %cst_61 = arith.constant 0.00999999977 : f32
      %98 = vector.broadcast %cst_61 : f32 to vector<2x128xf32>
      %99 = arith.mulf %98, %95 : vector<2x128xf32>
      %100 = arith.select %97, %95, %99 : vector<2x128xi1>, vector<2x128xf32>
      %c0_62 = arith.constant 0 : index
      %c0_63 = arith.constant 0 : index
      %101 = vector.load %arg17[%c0_62, %c0_63] : memref<128x128xf32, #tpu.memory_space<vmem>>, vector<128x128xf32>
      %cst_64 = arith.constant dense<0.000000e+00> : vector<2x128xf32>
      %102 = tpu.matmul %100, %101, %cst_64 {dimension_numbers = #tpu.dot_dimension_numbers<[1], [0], [0], [1], [0, 0, 1, 1], [], []>} : vector<2x128xf32>, vector<128x128xf32>, vector<2x128xf32> -> vector<2x128xf32>
      %c0_65 = arith.constant 0 : index
      %c0_66 = arith.constant 0 : index
      %103 = vector.load %arg18[%c0_65, %c0_66] : memref<1x128xf32, #tpu.memory_space<vmem>>, vector<1x128xf32>
      %104 = vector.broadcast %103 : vector<1x128xf32> to vector<2x128xf32>
      %105 = arith.addf %102, %104 : vector<2x128xf32>
      %cst_67 = arith.constant 0.000000e+00 : f32
      %106 = vector.broadcast %cst_67 : f32 to vector<2x128xf32>
      %107 = arith.cmpf ogt, %105, %106 : vector<2x128xf32>
      %cst_68 = arith.constant 0.00999999977 : f32
      %108 = vector.broadcast %cst_68 : f32 to vector<2x128xf32>
      %109 = arith.mulf %108, %105 : vector<2x128xf32>
      %110 = arith.select %107, %105, %109 : vector<2x128xi1>, vector<2x128xf32>
      %c0_69 = arith.constant 0 : index
      %c0_70 = arith.constant 0 : index
      %111 = vector.load %arg19[%c0_69, %c0_70] : memref<128x1xf32, #tpu.memory_space<vmem>>, vector<128x1xf32>
      %cst_71 = arith.constant dense<0.000000e+00> : vector<2x1xf32>
      %112 = tpu.matmul %110, %111, %cst_71 {dimension_numbers = #tpu.dot_dimension_numbers<[1], [0], [0], [1], [0, 0, 1, 1], [], []>} : vector<2x128xf32>, vector<128x1xf32>, vector<2x1xf32> -> vector<2x1xf32>
      %c0_72 = arith.constant 0 : index
      %c0_73 = arith.constant 0 : index
      %113 = vector.load %arg20[%c0_72, %c0_73] : memref<1x1xf32, #tpu.memory_space<vmem>>, vector<1x1xf32>
      %114 = vector.broadcast %113 : vector<1x1xf32> to vector<2x1xf32>
      %115 = arith.addf %112, %114 : vector<2x1xf32>
      %cst_74 = arith.constant 5.000000e+00 : f32
      %116 = vector.broadcast %cst_74 : f32 to vector<2x1xf32>
      %117 = arith.mulf %116, %115 : vector<2x1xf32>
      %c0_75 = arith.constant 0 : index
      %c0_76 = arith.constant 0 : index
      %118 = vector.load %arg21[%c0_75, %c0_76] : memref<2x1xf32, #tpu.memory_space<vmem>>, vector<2x1xf32>
      tpu.vector_store %arg21[%c0_75, %c0_76], %117 {strides = array<i32>} : memref<2x1xf32, #tpu.memory_space<vmem>>, vector<2x1xf32>,
    } else {
    }
    return
  }
  func.func @transform_0(%arg0: i32, %arg1: i32) -> (i32, i32, i32) {
    %c0_i32 = arith.constant 0 : i32
    %c0_i32_0 = arith.constant 0 : i32
    return %arg0, %c0_i32, %arg1 : i32, i32, i32
  }
  func.func @transform_1(%arg0: i32, %arg1: i32) -> (i32, i32) {
    %c0_i32 = arith.constant 0 : i32
    %c0_i32_0 = arith.constant 0 : i32
    return %arg0, %c0_i32 : i32, i32
  }
  func.func @transform_2(%arg0: i32, %arg1: i32) -> (i32, i32) {
    %c0_i32 = arith.constant 0 : i32
    %c0_i32_0 = arith.constant 0 : i32
    return %arg0, %c0_i32 : i32, i32
  }
  func.func @transform_3(%arg0: i32, %arg1: i32) -> (i32, i32) {
    %c0_i32 = arith.constant 0 : i32
    %c0_i32_0 = arith.constant 0 : i32
    %c0_i32_1 = arith.constant 0 : i32
    return %c0_i32, %c0_i32_0 : i32, i32
  }
  func.func @transform_4(%arg0: i32, %arg1: i32) -> (i32, i32) {
    %c0_i32 = arith.constant 0 : i32
    %c0_i32_0 = arith.constant 0 : i32
    %c0_i32_1 = arith.constant 0 : i32
    return %c0_i32, %c0_i32_0 : i32, i32
  }
  func.func @transform_5(%arg0: i32, %arg1: i32) -> (i32, i32) {
    %c0_i32 = arith.constant 0 : i32
    %c0_i32_0 = arith.constant 0 : i32
    %c0_i32_1 = arith.constant 0 : i32
    return %c0_i32, %c0_i32_0 : i32, i32
  }
  func.func @transform_6(%arg0: i32, %arg1: i32) -> (i32, i32) {
    %c0_i32 = arith.constant 0 : i32
    %c0_i32_0 = arith.constant 0 : i32
    %c0_i32_1 = arith.constant 0 : i32
    return %c0_i32, %c0_i32_0 : i32, i32
  }
  func.func @transform_7(%arg0: i32, %arg1: i32) -> (i32, i32) {
    %c0_i32 = arith.constant 0 : i32
    %c0_i32_0 = arith.constant 0 : i32
    %c0_i32_1 = arith.constant 0 : i32
    return %c0_i32, %c0_i32_0 : i32, i32
  }
  func.func @transform_8(%arg0: i32, %arg1: i32) -> (i32, i32) {
    %c0_i32 = arith.constant 0 : i32
    %c0_i32_0 = arith.constant 0 : i32
    %c0_i32_1 = arith.constant 0 : i32
    return %c0_i32, %c0_i32_0 : i32, i32
  }
  func.func @transform_9(%arg0: i32, %arg1: i32) -> (i32, i32) {
    %c0_i32 = arith.constant 0 : i32
    %c0_i32_0 = arith.constant 0 : i32
    %c0_i32_1 = arith.constant 0 : i32
    return %c0_i32, %c0_i32_0 : i32, i32
  }
  func.func @transform_10(%arg0: i32, %arg1: i32) -> (i32, i32) {
    %c0_i32 = arith.constant 0 : i32
    %c0_i32_0 = arith.constant 0 : i32
    %c0_i32_1 = arith.constant 0 : i32
    return %c0_i32, %c0_i32_0 : i32, i32
  }
  func.func @transform_11(%arg0: i32, %arg1: i32) -> (i32, i32) {
    %c0_i32 = arith.constant 0 : i32
    %c0_i32_0 = arith.constant 0 : i32
    %c0_i32_1 = arith.constant 0 : i32
    return %c0_i32, %c0_i32_0 : i32, i32
  }
  func.func @transform_12(%arg0: i32, %arg1: i32) -> (i32, i32) {
    %c0_i32 = arith.constant 0 : i32
    %c0_i32_0 = arith.constant 0 : i32
    %c0_i32_1 = arith.constant 0 : i32
    return %c0_i32, %c0_i32_0 : i32, i32
  }
  func.func @transform_13(%arg0: i32, %arg1: i32) -> (i32, i32) {
    %c0_i32 = arith.constant 0 : i32
    %c0_i32_0 = arith.constant 0 : i32
    %c0_i32_1 = arith.constant 0 : i32
    return %c0_i32, %c0_i32_0 : i32, i32
  }
  func.func @transform_14(%arg0: i32, %arg1: i32) -> (i32, i32) {
    %c0_i32 = arith.constant 0 : i32
    %c0_i32_0 = arith.constant 0 : i32
    %c0_i32_1 = arith.constant 0 : i32
    return %c0_i32, %c0_i32_0 : i32, i32
  }
  func.func @transform_15(%arg0: i32, %arg1: i32) -> (i32, i32) {
    %c0_i32 = arith.constant 0 : i32
    %c0_i32_0 = arith.constant 0 : i32
    %c0_i32_1 = arith.constant 0 : i32
    return %c0_i32, %c0_i32_0 : i32, i32
  }
  func.func @transform_16(%arg0: i32, %arg1: i32) -> (i32, i32) {
    %c0_i32 = arith.constant 0 : i32
    %c0_i32_0 = arith.constant 0 : i32
    %c0_i32_1 = arith.constant 0 : i32
    return %c0_i32, %c0_i32_0 : i32, i32
  }
  func.func @transform_17(%arg0: i32, %arg1: i32) -> (i32, i32) {
    %c0_i32 = arith.constant 0 : i32
    %c0_i32_0 = arith.constant 0 : i32
    %c0_i32_1 = arith.constant 0 : i32
    return %c0_i32, %c0_i32_0 : i32, i32
  }
  func.func @transform_18(%arg0: i32, %arg1: i32) -> (i32, i32) {
    %c0_i32 = arith.constant 0 : i32
    %c0_i32_0 = arith.constant 0 : i32
    %c0_i32_1 = arith.constant 0 : i32
    return %c0_i32, %c0_i32_0 : i32, i32
  }
  func.func @transform_19(%arg0: i32, %arg1: i32) -> (i32, i32) {
    %c0_i32 = arith.constant 0 : i32
    %c0_i32_0 = arith.constant 0 : i32
    return %arg0, %c0_i32 : i32, i32
  }
}

</mosaic_0001>

<llo_original>
// kernel: tpu_custom_call.1
$region0: #{tpu_custom_call.1}
  #allocation0 [shape = 'u32[]', space=smem, size = 0x4, offset = 0x4, fixed_abs, tag = 'smem constant byte address 0x4 - core index']
  #allocation1 [shape = 'u32[144,128]{1,0:T(1,128)}', space=vmem, size = 0x12000, scoped, tag = 'internal scratch']
  #allocation2 [shape = 'f32[2,128]{1,0:T(2,128)}', space=vmem, size = 0x400, scoped, tag = 'scratch operand']
  #allocation3 [shape = 'f32[1,1]{1,0:T(1,128)S(1)}', space=vmem, size = 0x200, scoped, tag = 'scoped memory for tpu_custom_call.1']
  %s0 = inlined_call_operand.hbm [shape: f32[2,8,8], index: 0, kind: input, shape index: {}]
  %s1 = inlined_call_operand.vmem [shape: f32[2,256], index: 1, kind: input, shape index: {}]
  %s2 = inlined_call_operand.vmem [shape: f32[2,128], index: 2, kind: input, shape index: {}]
  %s3 = inlined_call_operand.hbm [shape: f32[8,256], index: 3, kind: input, shape index: {}]
  %s4 = inlined_call_operand.vmem [shape: f32[128,128], index: 4, kind: input, shape index: {}]
  %s5 = inlined_call_operand.vmem [shape: f32[1,128], index: 5, kind: input, shape index: {}]
  %s6 = inlined_call_operand.hbm [shape: f32[128,128], index: 6, kind: input, shape index: {}]
  %s7 = inlined_call_operand.vmem [shape: f32[1,128], index: 7, kind: input, shape index: {}]
  %s8 = inlined_call_operand.hbm [shape: f32[128,128], index: 8, kind: input, shape index: {}]
  %s9 = inlined_call_operand.hbm [shape: f32[128,128], index: 9, kind: input, shape index: {}]
  %s10 = inlined_call_operand.vmem [shape: f32[1,128], index: 10, kind: input, shape index: {}]
  %s11 = inlined_call_operand.hbm [shape: f32[128,128], index: 11, kind: input, shape index: {}]
  %s12 = inlined_call_operand.vmem [shape: f32[1,128], index: 12, kind: input, shape index: {}]
  %s13 = inlined_call_operand.hbm [shape: f32[128,128], index: 13, kind: input, shape index: {}]
  %s14 = inlined_call_operand.vmem [shape: f32[1,128], index: 14, kind: input, shape index: {}]
  %s15 = inlined_call_operand.hbm [shape: f32[128,128], index: 15, kind: input, shape index: {}]
  %s16 = inlined_call_operand.vmem [shape: f32[1,128], index: 16, kind: input, shape index: {}]
  %s17 = inlined_call_operand.vmem [shape: f32[128,1], index: 17, kind: input, shape index: {}]
  %s18 = inlined_call_operand.<no memory space> [shape: f32[1,1], index: 18, kind: input, shape index: {}]
  %s19 = inlined_call_operand.vmem [shape: f32[2,1], index: 19, kind: output, shape index: {}]
  %s20 = sld [smem:[#allocation0]]
  $region126: #{tpu_custom_call.1} parent=0
    _
  %s22 = ssub.s32 1, %s20
  %s23 = scalar_select 0, %s22, %s20
  %v24 = vstv %s18
  %25 = vst [vmem:[#allocation3] sm:$0x1] %v24
  $region1: #{tpu_custom_call.1} parent=0
    #allocation4 [shape = 'u8[8192]{0}', space=vmem, size = 0x2000, scoped, tag = 'input window, operand 0, single buffered']
    #allocation5 [shape = 's32[1]{0}', space=sflag, size = 0x4, scoped, tag = 'scoped memory for tpu_custom_call.1']
    #allocation6 [shape = 'u8[8192]{0}', space=vmem, size = 0x2000, scoped, tag = 'input window, operand 3, single buffered']
    #allocation7 [shape = 's32[1]{0}', space=sflag, size = 0x4, scoped, tag = 'scoped memory for tpu_custom_call.1']
    #allocation8 [shape = 'u8[65536]{0}', space=vmem, size = 0x10000, scoped, tag = 'input window, operand 6, single buffered']
    #allocation9 [shape = 'u8[65536]{0}', space=vmem, size = 0x10000, scoped, tag = 'input window, operand 8, single buffered']
    #allocation10 [shape = 's32[1]{0}', space=sflag, size = 0x4, scoped, tag = 'scoped memory for tpu_custom_call.1']
    #allocation11 [shape = 'u8[65536]{0}', space=vmem, size = 0x10000, scoped, tag = 'input window, operand 9, single buffered']
    #allocation12 [shape = 'u8[65536]{0}', space=vmem, size = 0x10000, scoped, tag = 'input window, operand 11, single buffered']
    #allocation13 [shape = 's32[1]{0}', space=sflag, size = 0x4, scoped, tag = 'scoped memory for tpu_custom_call.1']
    #allocation14 [shape = 'u8[65536]{0}', space=vmem, size = 0x10000, scoped, tag = 'input window, operand 13, single buffered']
    #allocation15 [shape = 'u8[65536]{0}', space=vmem, size = 0x10000, scoped, tag = 'input window, operand 15, single buffered']
    #allocation16 [shape = 's32[1]{0}', space=sflag, size = 0x4, scoped, tag = 'scoped memory for tpu_custom_call.1']
    %26 = vsyncpa [#allocation5], 0
    %27 = vsyncpa [#allocation7], 0
    %28 = vsyncpa [#allocation10], 0
    %29 = vsyncpa [#allocation13], 0
    %30 = vsyncpa [#allocation16], 0
    // Predicated region
    $region2: #{tpu_custom_call.1} parent=1 // pred_check
      _
    $region3: #{tpu_custom_call.1} parent=1 // pred_check_branch
      %32 = sbr.rel (0) target = $region5
    $region4: #{tpu_custom_call.1} parent=1 // pred_region
      %s34 = ssub.s32 256, 256
      %35 = vsyncadd [#allocation5], %s34
      %s36 = sshll.u32 [#allocation4], 4
      %s37 = int_to_ptr.vmem [resolvable:$true] %s36
      %42 = dma.hbm_to_vmem [thread:$0]  %s0, 256, %s37, [#allocation5], 128, 128, 8
    $region5: #{tpu_custom_call.1} parent=1 // pred_fallthru
      _
    // Predicated region
    $region6: #{tpu_custom_call.1} parent=1 // pred_check
      _
    $region7: #{tpu_custom_call.1} parent=1 // pred_check_branch
      %44 = sbr.rel (0) target = $region9
    $region8: #{tpu_custom_call.1} parent=1 // pred_region
      _
    $region9: #{tpu_custom_call.1} parent=1 // pred_fallthru
      _
    // Predicated region
    $region10: #{tpu_custom_call.1} parent=1 // pred_check
      _
    $region11: #{tpu_custom_call.1} parent=1 // pred_check_branch
      %46 = sbr.rel (0) target = $region13
    $region12: #{tpu_custom_call.1} parent=1 // pred_region
      _
    $region13: #{tpu_custom_call.1} parent=1 // pred_fallthru
      _
    // Predicated region
    $region14: #{tpu_custom_call.1} parent=1 // pred_check
      _
    $region15: #{tpu_custom_call.1} parent=1 // pred_check_branch
      %48 = sbr.rel (0) target = $region17
    $region16: #{tpu_custom_call.1} parent=1 // pred_region
      %s50 = ssub.s32 256, 256
      %51 = vsyncadd [#allocation7], %s50
      %s53 = sshll.u32 [#allocation6], 4
      %s54 = int_to_ptr.vmem [resolvable:$true] %s53
      %56 = dma.hbm_to_vmem [thread:$0]  %s3, 256, %s54, [#allocation7]
    $region17: #{tpu_custom_call.1} parent=1 // pred_fallthru
      _
    // Predicated region
    $region18: #{tpu_custom_call.1} parent=1 // pred_check
      _
    $region19: #{tpu_custom_call.1} parent=1 // pred_check_branch
      %58 = sbr.rel (0) target = $region21
    $region20: #{tpu_custom_call.1} parent=1 // pred_region
      _
    $region21: #{tpu_custom_call.1} parent=1 // pred_fallthru
      _
    // Predicated region
    $region22: #{tpu_custom_call.1} parent=1 // pred_check
      _
    $region23: #{tpu_custom_call.1} parent=1 // pred_check_branch
      %60 = sbr.rel (0) target = $region25
    $region24: #{tpu_custom_call.1} parent=1 // pred_region
      _
    $region25: #{tpu_custom_call.1} parent=1 // pred_fallthru
      _
    // Predicated region
    $region26: #{tpu_custom_call.1} parent=1 // pred_check
      _
    $region27: #{tpu_custom_call.1} parent=1 // pred_check_branch
      %62 = sbr.rel (0) target = $region29
    $region28: #{tpu_custom_call.1} parent=1 // pred_region
      %s64 = ssub.s32 2048, 2048
      %65 = vsyncadd [#allocation7], %s64
      %s66 = sshll.u32 [#allocation8], 4
      %s67 = int_to_ptr.vmem [resolvable:$true] %s66
      %72 = dma.hbm_to_vmem [thread:$0]  %s6, 2048, %s67, [#allocation7], 128, 128, 8
    $region29: #{tpu_custom_call.1} parent=1 // pred_fallthru
      _
    // Predicated region
    $region30: #{tpu_custom_call.1} parent=1 // pred_check
      _
    $region31: #{tpu_custom_call.1} parent=1 // pred_check_branch
      %74 = sbr.rel (0) target = $region33
    $region32: #{tpu_custom_call.1} parent=1 // pred_region
      _
    $region33: #{tpu_custom_call.1} parent=1 // pred_fallthru
      _
    // Predicated region
    $region34: #{tpu_custom_call.1} parent=1 // pred_check
      _
    $region35: #{tpu_custom_call.1} parent=1 // pred_check_branch
      %76 = sbr.rel (0) target = $region37
    $region36: #{tpu_custom_call.1} parent=1 // pred_region
      %s78 = ssub.s32 2048, 2048
      %79 = vsyncadd [#allocation10], %s78
      %s80 = sshll.u32 [#allocation9], 4
      %s81 = int_to_ptr.vmem [resolvable:$true] %s80
      %86 = dma.hbm_to_vmem [thread:$0]  %s8, 2048, %s81, [#allocation10], 128, 128, 8
    $region37: #{tpu_custom_call.1} parent=1 // pred_fallthru
      _
    // Predicated region
    $region38: #{tpu_custom_call.1} parent=1 // pred_check
      _
    $region39: #{tpu_custom_call.1} parent=1 // pred_check_branch
      %88 = sbr.rel (0) target = $region41
    $region40: #{tpu_custom_call.1} parent=1 // pred_region
      %s90 = ssub.s32 2048, 2048
      %91 = vsyncadd [#allocation10], %s90
      %s92 = sshll.u32 [#allocation11], 4
      %s93 = int_to_ptr.vmem [resolvable:$true] %s92
      %98 = dma.hbm_to_vmem [thread:$0]  %s9, 2048, %s93, [#allocation10], 128, 128, 8
    $region41: #{tpu_custom_call.1} parent=1 // pred_fallthru
      _
    // Predicated region
    $region42: #{tpu_custom_call.1} parent=1 // pred_check
      _
    $region43: #{tpu_custom_call.1} parent=1 // pred_check_branch
      %100 = sbr.rel (0) target = $region45
    $region44: #{tpu_custom_call.1} parent=1 // pred_region
      _
    $region45: #{tpu_custom_call.1} parent=1 // pred_fallthru
      _
    // Predicated region
    $region46: #{tpu_custom_call.1} parent=1 // pred_check
      _
    $region47: #{tpu_custom_call.1} parent=1 // pred_check_branch
      %102 = sbr.rel (0) target = $region49
    $region48: #{tpu_custom_call.1} parent=1 // pred_region
      %s104 = ssub.s32 2048, 2048
      %105 = vsyncadd [#allocation13], %s104
      %s106 = sshll.u32 [#allocation12], 4
      %s107 = int_to_ptr.vmem [resolvable:$true] %s106
      %112 = dma.hbm_to_vmem [thread:$0]  %s11, 2048, %s107, [#allocation13], 128, 128, 8
    $region49: #{tpu_custom_call.1} parent=1 // pred_fallthru
      _
    // Predicated region
    $region50: #{tpu_custom_call.1} parent=1 // pred_check
      _
    $region51: #{tpu_custom_call.1} parent=1 // pred_check_branch
      %114 = sbr.rel (0) target = $region53
    $region52: #{tpu_custom_call.1} parent=1 // pred_region
      _
    $region53: #{tpu_custom_call.1} parent=1 // pred_fallthru
      _
    // Predicated region
    $region54: #{tpu_custom_call.1} parent=1 // pred_check
      _
    $region55: #{tpu_custom_call.1} parent=1 // pred_check_branch
      %116 = sbr.rel (0) target = $region57
    $region56: #{tpu_custom_call.1} parent=1 // pred_region
      %s118 = ssub.s32 2048, 2048
      %119 = vsyncadd [#allocation13], %s118
      %s120 = sshll.u32 [#allocation14], 4
      %s121 = int_to_ptr.vmem [resolvable:$true] %s120
      %126 = dma.hbm_to_vmem [thread:$0]  %s13, 2048, %s121, [#allocation13], 128, 128, 8
    $region57: #{tpu_custom_call.1} parent=1 // pred_fallthru
      _
    // Predicated region
    $region58: #{tpu_custom_call.1} parent=1 // pred_check
      _
    $region59: #{tpu_custom_call.1} parent=1 // pred_check_branch
      %128 = sbr.rel (0) target = $region61
    $region60: #{tpu_custom_call.1} parent=1 // pred_region
      _
    $region61: #{tpu_custom_call.1} parent=1 // pred_fallthru
      _
    // Predicated region
    $region62: #{tpu_custom_call.1} parent=1 // pred_check
      _
    $region63: #{tpu_custom_call.1} parent=1 // pred_check_branch
      %130 = sbr.rel (0) target = $region65
    $region64: #{tpu_custom_call.1} parent=1 // pred_region
      %s132 = ssub.s32 2048, 2048
      %133 = vsyncadd [#allocation16], %s132
      %s134 = sshll.u32 [#allocation15], 4
      %s135 = int_to_ptr.vmem [resolvable:$true] %s134
      %140 = dma.hbm_to_vmem [thread:$0]  %s15, 2048, %s135, [#allocation16], 128, 128, 8
    $region65: #{tpu_custom_call.1} parent=1 // pred_fallthru
      _
    // Predicated region
    $region66: #{tpu_custom_call.1} parent=1 // pred_check
      _
    $region67: #{tpu_custom_call.1} parent=1 // pred_check_branch
      %142 = sbr.rel (0) target = $region69
    $region68: #{tpu_custom_call.1} parent=1 // pred_region
      _
    $region69: #{tpu_custom_call.1} parent=1 // pred_fallthru
      _
    // Predicated region
    $region70: #{tpu_custom_call.1} parent=1 // pred_check
      _
    $region71: #{tpu_custom_call.1} parent=1 // pred_check_branch
      %144 = sbr.rel (0) target = $region73
    $region72: #{tpu_custom_call.1} parent=1 // pred_region
      _
    $region73: #{tpu_custom_call.1} parent=1 // pred_fallthru
      _
    // Predicated region
    $region74: #{tpu_custom_call.1} parent=1 // pred_check
      _
    $region75: #{tpu_custom_call.1} parent=1 // pred_check_branch
      %146 = sbr.rel (0) target = $region77
    $region76: #{tpu_custom_call.1} parent=1 // pred_region
      _
    $region77: #{tpu_custom_call.1} parent=1 // pred_fallthru
      _
    // Predicated region
    $region78: #{tpu_custom_call.1} parent=1 // pred_check
      _
    $region79: #{tpu_custom_call.1} parent=1 // pred_check_branch
      %148 = sbr.rel (0) target = $region81
    $region80: #{tpu_custom_call.1} parent=1 // pred_region
      %149 = dma.done [#allocation5], 256
    $region81: #{tpu_custom_call.1} parent=1 // pred_fallthru
      _
    // Predicated region
    $region82: #{tpu_custom_call.1} parent=1 // pred_check
      _
    $region83: #{tpu_custom_call.1} parent=1 // pred_check_branch
      %151 = sbr.rel (0) target = $region85
    $region84: #{tpu_custom_call.1} parent=1 // pred_region
      %152 = dma.done [#allocation7], 256
    $region85: #{tpu_custom_call.1} parent=1 // pred_fallthru
      _
    // Predicated region
    $region86: #{tpu_custom_call.1} parent=1 // pred_check
      _
    $region87: #{tpu_custom_call.1} parent=1 // pred_check_branch
      %154 = sbr.rel (0) target = $region89
    $region88: #{tpu_custom_call.1} parent=1 // pred_region
      %155 = dma.done [#allocation7], 2048
    $region89: #{tpu_custom_call.1} parent=1 // pred_fallthru
      _
    // Predicated region
    $region90: #{tpu_custom_call.1} parent=1 // pred_check
      _
    $region91: #{tpu_custom_call.1} parent=1 // pred_check_branch
      %157 = sbr.rel (0) target = $region93
    $region92: #{tpu_custom_call.1} parent=1 // pred_region
      %158 = dma.done [#allocation10], 2048
    $region93: #{tpu_custom_call.1} parent=1 // pred_fallthru
      _
    // Predicated region
    $region94: #{tpu_custom_call.1} parent=1 // pred_check
      _
    $region95: #{tpu_custom_call.1} parent=1 // pred_check_branch
      %160 = sbr.rel (0) target = $region97
    $region96: #{tpu_custom_call.1} parent=1 // pred_region
      %161 = dma.done [#allocation10], 2048
    $region97: #{tpu_custom_call.1} parent=1 // pred_fallthru
      _
    // Predicated region
    $region98: #{tpu_custom_call.1} parent=1 // pred_check
      _
    $region99: #{tpu_custom_call.1} parent=1 // pred_check_branch
      %163 = sbr.rel (0) target = $region101
    $region100: #{tpu_custom_call.1} parent=1 // pred_region
      %164 = dma.done [#allocation13], 2048
    $region101: #{tpu_custom_call.1} parent=1 // pred_fallthru
      _
    // Predicated region
    $region102: #{tpu_custom_call.1} parent=1 // pred_check
      _
    $region103: #{tpu_custom_call.1} parent=1 // pred_check_branch
      %166 = sbr.rel (0) target = $region105
    $region104: #{tpu_custom_call.1} parent=1 // pred_region
      %167 = dma.done [#allocation13], 2048
    $region105: #{tpu_custom_call.1} parent=1 // pred_fallthru
      _
    // Predicated region
    $region106: #{tpu_custom_call.1} parent=1 // pred_check
      _
    $region107: #{tpu_custom_call.1} parent=1 // pred_check_branch
      %169 = sbr.rel (0) target = $region109
    $region108: #{tpu_custom_call.1} parent=1 // pred_region
      %170 = dma.done [#allocation16], 2048
    $region109: #{tpu_custom_call.1} parent=1 // pred_fallthru
      _
    %p171 = scmp.eq.s32.totalorder 0, 0
    // Predicated region
    $region110: #{tpu_custom_call.1} parent=1 // pred_check
      %p172 = pneg %p171
    $region111: #{tpu_custom_call.1} parent=1 // pred_check_branch
      %174 = sbr.rel (%p172) target = $region113
    $region112: #{tpu_custom_call.1} parent=1 // pred_region
      %175 = vst [vmem:[#allocation2] sm:$0x3] 0.0
    $region113: #{tpu_custom_call.1} parent=1 // pred_fallthru
      _
    %v176 = vld [vmem:[#allocation4] sm:$0xff]
    %v177 = vld [vmem:[#allocation4 + $0x8] sm:$0xff]
    %178 = vxpose.xlu0.b32.start [1/16] %v176, 128
    %179 = vxpose.xlu0.b32.cont [2/16] 0.0, 128
    %180 = vxpose.xlu0.b32.cont [3/16] 0.0, 128
    %181 = vxpose.xlu0.b32.cont [4/16] 0.0, 128
    %182 = vxpose.xlu0.b32.cont [5/16] 0.0, 128
    %183 = vxpose.xlu0.b32.cont [6/16] 0.0, 128
    %184 = vxpose.xlu0.b32.cont [7/16] 0.0, 128
    %185 = vxpose.xlu0.b32.cont [8/16] 0.0, 128
    %186 = vxpose.xlu0.b32.cont [9/16] 0.0, 128
    %187 = vxpose.xlu0.b32.cont [10/16] 0.0, 128
    %188 = vxpose.xlu0.b32.cont [11/16] 0.0, 128
    %189 = vxpose.xlu0.b32.cont [12/16] 0.0, 128
    %190 = vxpose.xlu0.b32.cont [13/16] 0.0, 128
    %191 = vxpose.xlu0.b32.cont [14/16] 0.0, 128
    %192 = vxpose.xlu0.b32.cont [15/16] 0.0, 128
    %193 = vxpose.xlu0.b32.end [16/16] 0.0, 128
    %v194 = vpop.trf.xlu0
    %v195 = vpop.trf.xlu0
    %v196 = vpop.trf.xlu0
    %v197 = vpop.trf.xlu0
    %v198 = vpop.trf.xlu0
    %v199 = vpop.trf.xlu0
    %v200 = vpop.trf.xlu0
    %v201 = vpop.trf.xlu0
    %v202 = vpop.trf.xlu0
    %v203 = vpop.trf.xlu0
    %v204 = vpop.trf.xlu0
    %v205 = vpop.trf.xlu0
    %v206 = vpop.trf.xlu0
    %v207 = vpop.trf.xlu0
    %v208 = vpop.trf.xlu0
    %v209 = vpop.trf.xlu0
    %210 = vxpose.xlu0.b32.start [1/16] %v177, 128
    %211 = vxpose.xlu0.b32.cont [2/16] 0.0, 128
    %212 = vxpose.xlu0.b32.cont [3/16] 0.0, 128
    %213 = vxpose.xlu0.b32.cont [4/16] 0.0, 128
    %214 = vxpose.xlu0.b32.cont [5/16] 0.0, 128
    %215 = vxpose.xlu0.b32.cont [6/16] 0.0, 128
    %216 = vxpose.xlu0.b32.cont [7/16] 0.0, 128
    %217 = vxpose.xlu0.b32.cont [8/16] 0.0, 128
    %218 = vxpose.xlu0.b32.cont [9/16] 0.0, 128
    %219 = vxpose.xlu0.b32.cont [10/16] 0.0, 128
    %220 = vxpose.xlu0.b32.cont [11/16] 0.0, 128
    %221 = vxpose.xlu0.b32.cont [12/16] 0.0, 128
    %222 = vxpose.xlu0.b32.cont [13/16] 0.0, 128
    %223 = vxpose.xlu0.b32.cont [14/16] 0.0, 128
    %224 = vxpose.xlu0.b32.cont [15/16] 0.0, 128
    %225 = vxpose.xlu0.b32.end [16/16] 0.0, 128
    %v226 = vpop.trf.xlu0
    %v227 = vpop.trf.xlu0
    %v228 = vpop.trf.xlu0
    %v229 = vpop.trf.xlu0
    %v230 = vpop.trf.xlu0
    %v231 = vpop.trf.xlu0
    %v232 = vpop.trf.xlu0
    %v233 = vpop.trf.xlu0
    %v234 = vpop.trf.xlu0
    %v235 = vpop.trf.xlu0
    %v236 = vpop.trf.xlu0
    %v237 = vpop.trf.xlu0
    %v238 = vpop.trf.xlu0
    %v239 = vpop.trf.xlu0
    %v240 = vpop.trf.xlu0
    %v241 = vpop.trf.xlu0
    %v242 = vld [vmem:[#allocation6] sm:$0xff]
    %v243 = vld [vmem:[#allocation6 + $0x8] sm:$0xff]
    %vm244 = vcmask 64512
    %v246 = vsel %vm244, %v194, 0
    %v249 = vsel %vm244, %v226, 0
    %251 = vmatprep.subr.mxu0 0.0
    %252 = vmatpush1.msra.mxu0 0.0
    %253 = vmatprep.subr.mxu0 0.0
    %254 = vmatpush1.msra.mxu0 0.0
    %255 = vmatprep.subr.mxu0 0.0
    %256 = vmatpush1.msra.mxu0 0.0
    %257 = vmatprep.subr.mxu0 0.0
    %258 = vmatpush1.msra.mxu0 0.0
    %259 = vmatprep.subr.mxu0 0.0
    %260 = vmatpush1.msra.mxu0 0.0
    %261 = vmatprep.subr.mxu0 0.0
    %262 = vmatpush1.msra.mxu0 0.0
    %263 = vmatprep.subr.mxu0 0.0
    %264 = vmatpush1.msra.mxu0 0.0
    %265 = vmatprep.subr.mxu0 0.0
    %266 = vmatpush1.msra.mxu0 0.0
    %267 = vmatprep.subr.mxu0 0.0
    %268 = vmatpush1.msra.mxu0 0.0
    %269 = vmatprep.subr.mxu0 0.0
    %270 = vmatpush1.msra.mxu0 0.0
    %271 = vmatprep.subr.mxu0 0.0
    %272 = vmatpush1.msra.mxu0 0.0
    %273 = vmatprep.subr.mxu0 0.0
    %274 = vmatpush1.msra.mxu0 0.0
    %275 = vmatprep.subr.mxu0 0.0
    %276 = vmatpush1.msra.mxu0 0.0
    %277 = vmatprep.subr.mxu0 0.0
    %278 = vmatpush1.msra.mxu0 0.0
    %279 = vmatprep.subr.mxu0 0.0
    %280 = vmatpush1.msra.mxu0 0.0
    %281 = vmatprep.subr.mxu0 %v243
    %282 = vmatpush1.msra.mxu0 %v242
    %283 = vmatprep.subr.mxu0 0.0
    %284 = vmatpush2.msra.mxu0 0.0
    %285 = vmatprep.subr.mxu0 0.0
    %286 = vmatpush2.msra.mxu0 0.0
    %287 = vmatprep.subr.mxu0 0.0
    %288 = vmatpush2.msra.mxu0 0.0
    %289 = vmatprep.subr.mxu0 0.0
    %290 = vmatpush2.msra.mxu0 0.0
    %291 = vmatprep.subr.mxu0 0.0
    %292 = vmatpush2.msra.mxu0 0.0
    %293 = vmatprep.subr.mxu0 0.0
    %294 = vmatpush2.msra.mxu0 0.0
    %295 = vmatprep.subr.mxu0 0.0
    %296 = vmatpush2.msra.mxu0 0.0
    %297 = vmatprep.subr.mxu0 0.0
    %298 = vmatpush2.msra.mxu0 0.0
    %299 = vmatprep.subr.mxu0 0.0
    %300 = vmatpush2.msra.mxu0 0.0
    %301 = vmatprep.subr.mxu0 0.0
    %302 = vmatpush2.msra.mxu0 0.0
    %303 = vmatprep.subr.mxu0 0.0
    %304 = vmatpush2.msra.mxu0 0.0
    %305 = vmatprep.subr.mxu0 0.0
    %306 = vmatpush2.msra.mxu0 0.0
    %307 = vmatprep.subr.mxu0 0.0
    %308 = vmatpush2.msra.mxu0 0.0
    %309 = vmatprep.subr.mxu0 0.0
    %310 = vmatpush2.msra.mxu0 0.0
    %311 = vmatprep.subr.mxu0 0.0
    %312 = vmatpush2.msra.mxu0 0.0
    %313 = vmatprep.subr.mxu0 0.0
    %314 = vmatpush2.msra.mxu0 0.0
    %315 = vmatprep.mubr.f32.mxu0 0.0
    %316 = vmatmul.mubr.f32.gmra.mxu0 %v246
    %v317 = vpop.f32.mrf.mxu0
    %v318 = vadd.f32 0.0, %v317
    %v319 = vpop.f32.mrf.mxu0
    %v320 = vadd.f32 0.0, %v319
    %321 = vmatprep.mubr.f32.mxu0 0.0
    %322 = vmatmul.mubr.f32.gmra.mxu0 %v249
    %v323 = vpop.f32.mrf.mxu0
    %v324 = vadd.f32 0.0, %v323
    %v325 = vpop.f32.mrf.mxu0
    %v326 = vadd.f32 0.0, %v325
    %327 = vdwg.mxu0
    %v328 = vld [vmem:[%s1] sm:$0xf]
    %v331 = vunpack.c.l.s4 1966171168
    %v332 = vunpack.c.0.s8 %v331
    %v333 = vlaneseq
    %v334 = vshrl.u32 %v333, 7
    %v335 = vsub.s32 %v332, %v334
    %v336 = vrot.slane %v328, %v335
    %v337 = vcombine.high %v336, %v336
    %v338 = vlaneseq
    %v339 = vshrl.u32 %v338, 7
    %v340 = vsub.s32 0, %v339
    %v341 = vrot.slane %v336, %v340
    %v342 = vlaneseq
    %v343 = vshrl.u32 %v342, 7
    %v344 = vsub.s32 0, %v343
    %v345 = vrot.slane %v337, %v344
    %v348 = vadd.f32 %v318, %v341
    %v349 = vadd.f32 %v324, %v345
    %vm350 = vcmp.gt.f32.partialorder %v348, 0.0
    %vm351 = vcmp.gt.f32.partialorder %v349, 0.0
    %v352 = vmul.f32 %v348, 0.01
    %v353 = vmul.f32 %v349, 0.01
    %v354 = vsel %vm350, %v348, %v352
    %v355 = vsel %vm351, %v349, %v353
    %v356 = vrot.slane %v336, 1
    %v357 = vrot.slane %v337, 1
    %v358 = vlaneseq
    %v359 = vshrl.u32 %v358, 7
    %v360 = vsub.s32 0, %v359
    %v361 = vrot.slane %v356, %v360
    %v362 = vlaneseq
    %v363 = vshrl.u32 %v362, 7
    %v364 = vsub.s32 0, %v363
    %v365 = vrot.slane %v357, %v364
    %v368 = vadd.f32 %v320, %v361
    %v369 = vadd.f32 %v326, %v365
    %v370 = vtanh.pop %v368
    %v371 = vtanh.pop %v369
    %v372 = vmul.f32 %v370, 0.5
    %v373 = vmul.f32 %v371, 0.5
    %v374 = vadd.f32 %v372, 0.5
    %v375 = vadd.f32 %v373, 0.5
    %v376 = vld [vmem:[%s4] sm:$0xff]
    %v377 = vld [vmem:[%s4 + $0x8] sm:$0xff]
    %v378 = vld [vmem:[%s4 + $0x10] sm:$0xff]
    %v379 = vld [vmem:[%s4 + $0x18] sm:$0xff]
    %v380 = vld [vmem:[%s4 + $0x20] sm:$0xff]
    %v381 = vld [vmem:[%s4 + $0x28] sm:$0xff]
    %v382 = vld [vmem:[%s4 + $0x30] sm:$0xff]
    %v383 = vld [vmem:[%s4 + $0x38] sm:$0xff]
    %v384 = vld [vmem:[%s4 + $0x40] sm:$0xff]
    %v385 = vld [vmem:[%s4 + $0x48] sm:$0xff]
    %v386 = vld [vmem:[%s4 + $0x50] sm:$0xff]
    %v387 = vld [vmem:[%s4 + $0x58] sm:$0xff]
    %v388 = vld [vmem:[%s4 + $0x60] sm:$0xff]
    %v389 = vld [vmem:[%s4 + $0x68] sm:$0xff]
    %v390 = vld [vmem:[%s4 + $0x70] sm:$0xff]
    %v391 = vld [vmem:[%s4 + $0x78] sm:$0xff]
    %v392 = vld [vmem:[%s5] sm:$0x1]
    %v394 = vlaneseq
    %v395 = vshrl.u32 %v394, 7
    %v396 = vsub.s32 0, %v395
    %v397 = vrot.slane %v392, %v396
    %399 = vmatprep.subr.mxu0 0.0
    %400 = vmatpush1.msra.mxu0 %v391
    %401 = vmatprep.subr.mxu0 0.0
    %402 = vmatpush1.msra.mxu0 %v390
    %403 = vmatprep.subr.mxu0 0.0
    %404 = vmatpush1.msra.mxu0 %v389
    %405 = vmatprep.subr.mxu0 0.0
    %406 = vmatpush1.msra.mxu0 %v388
    %407 = vmatprep.subr.mxu0 0.0
    %408 = vmatpush1.msra.mxu0 %v387
    %409 = vmatprep.subr.mxu0 0.0
    %410 = vmatpush1.msra.mxu0 %v386
    %411 = vmatprep.subr.mxu0 0.0
    %412 = vmatpush1.msra.mxu0 %v385
    %413 = vmatprep.subr.mxu0 0.0
    %414 = vmatpush1.msra.mxu0 %v384
    %415 = vmatprep.subr.mxu0 0.0
    %416 = vmatpush1.msra.mxu0 %v383
    %417 = vmatprep.subr.mxu0 0.0
    %418 = vmatpush1.msra.mxu0 %v382
    %419 = vmatprep.subr.mxu0 0.0
    %420 = vmatpush1.msra.mxu0 %v381
    %421 = vmatprep.subr.mxu0 0.0
    %422 = vmatpush1.msra.mxu0 %v380
    %423 = vmatprep.subr.mxu0 0.0
    %424 = vmatpush1.msra.mxu0 %v379
    %425 = vmatprep.subr.mxu0 0.0
    %426 = vmatpush1.msra.mxu0 %v378
    %427 = vmatprep.subr.mxu0 0.0
    %428 = vmatpush1.msra.mxu0 %v377
    %429 = vmatprep.subr.mxu0 0.0
    %430 = vmatpush1.msra.mxu0 %v376
    %431 = vmatprep.subr.mxu0 0.0
    %432 = vmatpush2.msra.mxu0 0.0
    %433 = vmatprep.subr.mxu0 0.0
    %434 = vmatpush2.msra.mxu0 0.0
    %435 = vmatprep.subr.mxu0 0.0
    %436 = vmatpush2.msra.mxu0 0.0
    %437 = vmatprep.subr.mxu0 0.0
    %438 = vmatpush2.msra.mxu0 0.0
    %439 = vmatprep.subr.mxu0 0.0
    %440 = vmatpush2.msra.mxu0 0.0
    %441 = vmatprep.subr.mxu0 0.0
    %442 = vmatpush2.msra.mxu0 0.0
    %443 = vmatprep.subr.mxu0 0.0
    %444 = vmatpush2.msra.mxu0 0.0
    %445 = vmatprep.subr.mxu0 0.0
    %446 = vmatpush2.msra.mxu0 0.0
    %447 = vmatprep.subr.mxu0 0.0
    %448 = vmatpush2.msra.mxu0 0.0
    %449 = vmatprep.subr.mxu0 0.0
    %450 = vmatpush2.msra.mxu0 0.0
    %451 = vmatprep.subr.mxu0 0.0
    %452 = vmatpush2.msra.mxu0 0.0
    %453 = vmatprep.subr.mxu0 0.0
    %454 = vmatpush2.msra.mxu0 0.0
    %455 = vmatprep.subr.mxu0 0.0
    %456 = vmatpush2.msra.mxu0 0.0
    %457 = vmatprep.subr.mxu0 0.0
    %458 = vmatpush2.msra.mxu0 0.0
    %459 = vmatprep.subr.mxu0 0.0
    %460 = vmatpush2.msra.mxu0 0.0
    %461 = vmatprep.subr.mxu0 0.0
    %462 = vmatpush2.msra.mxu0 0.0
    %463 = vmatprep.mubr.f32.mxu0 0.0
    %464 = vmatmul.mubr.f32.gmra.mxu0 %v354
    %v465 = vpop.f32.mrf.mxu0
    %v466 = vadd.f32 %v397, %v465
    %v467 = vpop.f32.mrf.mxu0
    %468 = vmatprep.mubr.f32.mxu0 0.0
    %469 = vmatmul.mubr.f32.gmra.mxu0 %v355
    %v470 = vpop.f32.mrf.mxu0
    %v471 = vadd.f32 %v397, %v470
    %v472 = vpop.f32.mrf.mxu0
    %473 = vdwg.mxu0
    %vm474 = vcmp.gt.f32.partialorder %v466, 0.0
    %vm475 = vcmp.gt.f32.partialorder %v471, 0.0
    %v476 = vmul.f32 %v466, 0.01
    %v477 = vmul.f32 %v471, 0.01
    %v478 = vsel %vm474, %v466, %v476
    %v479 = vsel %vm475, %v471, %v477
    %v480 = vld [vmem:[#allocation8] sm:$0xff]
    %v481 = vld [vmem:[#allocation8 + $0x8] sm:$0xff]
    %v482 = vld [vmem:[#allocation8 + $0x10] sm:$0xff]
    %v483 = vld [vmem:[#allocation8 + $0x18] sm:$0xff]
    %v484 = vld [vmem:[#allocation8 + $0x20] sm:$0xff]
    %v485 = vld [vmem:[#allocation8 + $0x28] sm:$0xff]
    %v486 = vld [vmem:[#allocation8 + $0x30] sm:$0xff]
    %v487 = vld [vmem:[#allocation8 + $0x38] sm:$0xff]
    %v488 = vld [vmem:[#allocation8 + $0x40] sm:$0xff]
    %v489 = vld [vmem:[#allocation8 + $0x48] sm:$0xff]
    %v490 = vld [vmem:[#allocation8 + $0x50] sm:$0xff]
    %v491 = vld [vmem:[#allocation8 + $0x58] sm:$0xff]
    %v492 = vld [vmem:[#allocation8 + $0x60] sm:$0xff]
    %v493 = vld [vmem:[#allocation8 + $0x68] sm:$0xff]
    %v494 = vld [vmem:[#allocation8 + $0x70] sm:$0xff]
    %v495 = vld [vmem:[#allocation8 + $0x78] sm:$0xff]
    %v496 = vld [vmem:[%s7] sm:$0x1]
    %v498 = vlaneseq
    %v499 = vshrl.u32 %v498, 7
    %v500 = vsub.s32 0, %v499
    %v501 = vrot.slane %v496, %v500
    %503 = vmatprep.subr.mxu0 0.0
    %504 = vmatpush1.msra.mxu0 %v495
    %505 = vmatprep.subr.mxu0 0.0
    %506 = vmatpush1.msra.mxu0 %v494
    %507 = vmatprep.subr.mxu0 0.0
    %508 = vmatpush1.msra.mxu0 %v493
    %509 = vmatprep.subr.mxu0 0.0
    %510 = vmatpush1.msra.mxu0 %v492
    %511 = vmatprep.subr.mxu0 0.0
    %512 = vmatpush1.msra.mxu0 %v491
    %513 = vmatprep.subr.mxu0 0.0
    %514 = vmatpush1.msra.mxu0 %v490
    %515 = vmatprep.subr.mxu0 0.0
    %516 = vmatpush1.msra.mxu0 %v489
    %517 = vmatprep.subr.mxu0 0.0
    %518 = vmatpush1.msra.mxu0 %v488
    %519 = vmatprep.subr.mxu0 0.0
    %520 = vmatpush1.msra.mxu0 %v487
    %521 = vmatprep.subr.mxu0 0.0
    %522 = vmatpush1.msra.mxu0 %v486
    %523 = vmatprep.subr.mxu0 0.0
    %524 = vmatpush1.msra.mxu0 %v485
    %525 = vmatprep.subr.mxu0 0.0
    %526 = vmatpush1.msra.mxu0 %v484
    %527 = vmatprep.subr.mxu0 0.0
    %528 = vmatpush1.msra.mxu0 %v483
    %529 = vmatprep.subr.mxu0 0.0
    %530 = vmatpush1.msra.mxu0 %v482
    %531 = vmatprep.subr.mxu0 0.0
    %532 = vmatpush1.msra.mxu0 %v481
    %533 = vmatprep.subr.mxu0 0.0
    %534 = vmatpush1.msra.mxu0 %v480
    %535 = vmatprep.subr.mxu0 0.0
    %536 = vmatpush2.msra.mxu0 0.0
    %537 = vmatprep.subr.mxu0 0.0
    %538 = vmatpush2.msra.mxu0 0.0
    %539 = vmatprep.subr.mxu0 0.0
    %540 = vmatpush2.msra.mxu0 0.0
    %541 = vmatprep.subr.mxu0 0.0
    %542 = vmatpush2.msra.mxu0 0.0
    %543 = vmatprep.subr.mxu0 0.0
    %544 = vmatpush2.msra.mxu0 0.0
    %545 = vmatprep.subr.mxu0 0.0
    %546 = vmatpush2.msra.mxu0 0.0
    %547 = vmatprep.subr.mxu0 0.0
    %548 = vmatpush2.msra.mxu0 0.0
    %549 = vmatprep.subr.mxu0 0.0
    %550 = vmatpush2.msra.mxu0 0.0
    %551 = vmatprep.subr.mxu0 0.0
    %552 = vmatpush2.msra.mxu0 0.0
    %553 = vmatprep.subr.mxu0 0.0
    %554 = vmatpush2.msra.mxu0 0.0
    %555 = vmatprep.subr.mxu0 0.0
    %556 = vmatpush2.msra.mxu0 0.0
    %557 = vmatprep.subr.mxu0 0.0
    %558 = vmatpush2.msra.mxu0 0.0
    %559 = vmatprep.subr.mxu0 0.0
    %560 = vmatpush2.msra.mxu0 0.0
    %561 = vmatprep.subr.mxu0 0.0
    %562 = vmatpush2.msra.mxu0 0.0
    %563 = vmatprep.subr.mxu0 0.0
    %564 = vmatpush2.msra.mxu0 0.0
    %565 = vmatprep.subr.mxu0 0.0
    %566 = vmatpush2.msra.mxu0 0.0
    %567 = vmatprep.mubr.f32.mxu0 0.0
    %568 = vmatmul.mubr.f32.gmra.mxu0 %v478
    %v569 = vpop.f32.mrf.mxu0
    %v570 = vadd.f32 %v501, %v569
    %v571 = vpop.f32.mrf.mxu0
    %572 = vmatprep.mubr.f32.mxu0 0.0
    %573 = vmatmul.mubr.f32.gmra.mxu0 %v479
    %v574 = vpop.f32.mrf.mxu0
    %v575 = vadd.f32 %v501, %v574
    %v576 = vpop.f32.mrf.mxu0
    %577 = vdwg.mxu0
    %vm578 = vcmp.gt.f32.partialorder %v570, 0.0
    %vm579 = vcmp.gt.f32.partialorder %v575, 0.0
    %v580 = vmul.f32 %v570, 0.01
    %v581 = vmul.f32 %v575, 0.01
    %v582 = vsel %vm578, %v570, %v580
    %v583 = vsel %vm579, %v575, %v581
    %v584 = vld [vmem:[#allocation2] sm:$0x3]
    %586 = vset.pattern.permute.xlu0 0
    %587 = vperm.xlu0 %586, %v374
    %v588 = vpop.permute.xlu0 %587
    %591 = vset.pattern.permute.xlu0 0
    %592 = vperm.xlu0 %591, %v375
    %v593 = vpop.permute.xlu0 %592
    %v595 = vmul.f32 %v582, %v588
    %v596 = vmul.f32 %v583, %v593
    %v597 = vrot.slane %v595, 4
    %v598 = vadd.f32 %v595, %v597
    %v599 = vrot.slane %v598, 2
    %v600 = vadd.f32 %v598, %v599
    %v601 = vrot.slane %v600, 1
    %v602 = vadd.f32 %v600, %v601
    %v603 = vrot.slane %v596, 4
    %v604 = vadd.f32 %v596, %v603
    %v605 = vrot.slane %v604, 2
    %v606 = vadd.f32 %v604, %v605
    %v607 = vrot.slane %v606, 1
    %v608 = vadd.f32 %v606, %v607
    %vm611 = vcmask 1041409
    %v612 = vsel %vm611, %v608, %v602
    %v614 = vadd.f32 %v584, %v612
    %615 = vst [vmem:[#allocation2] sm:$0x3] %v614
    // Predicated region
    $region114: #{tpu_custom_call.1} parent=1 // pred_check
      %p616 = pneg %p171
    $region115: #{tpu_custom_call.1} parent=1 // pred_check_branch
      %618 = sbr.rel (%p616) target = $region117
    $region116: #{tpu_custom_call.1} parent=1 // pred_region
      %v619 = vld [vmem:[#allocation2] sm:$0x3]
      %v620 = vld [vmem:[#allocation9] sm:$0xff]
      %v621 = vld [vmem:[#allocation9 + $0x8] sm:$0xff]
      %v622 = vld [vmem:[#allocation9 + $0x10] sm:$0xff]
      %v623 = vld [vmem:[#allocation9 + $0x18] sm:$0xff]
      %v624 = vld [vmem:[#allocation9 + $0x20] sm:$0xff]
      %v625 = vld [vmem:[#allocation9 + $0x28] sm:$0xff]
      %v626 = vld [vmem:[#allocation9 + $0x30] sm:$0xff]
      %v627 = vld [vmem:[#allocation9 + $0x38] sm:$0xff]
      %v628 = vld [vmem:[#allocation9 + $0x40] sm:$0xff]
      %v629 = vld [vmem:[#allocation9 + $0x48] sm:$0xff]
      %v630 = vld [vmem:[#allocation9 + $0x50] sm:$0xff]
      %v631 = vld [vmem:[#allocation9 + $0x58] sm:$0xff]
      %v632 = vld [vmem:[#allocation9 + $0x60] sm:$0xff]
      %v633 = vld [vmem:[#allocation9 + $0x68] sm:$0xff]
      %v634 = vld [vmem:[#allocation9 + $0x70] sm:$0xff]
      %v635 = vld [vmem:[#allocation9 + $0x78] sm:$0xff]
      %v636 = vld [vmem:[%s2] sm:$0x3]
      %637 = vmatprep.subr.mxu0 0.0
      %638 = vmatpush1.msra.mxu0 %v635
      %639 = vmatprep.subr.mxu0 0.0
      %640 = vmatpush1.msra.mxu0 %v634
      %641 = vmatprep.subr.mxu0 0.0
      %642 = vmatpush1.msra.mxu0 %v633
      %643 = vmatprep.subr.mxu0 0.0
      %644 = vmatpush1.msra.mxu0 %v632
      %645 = vmatprep.subr.mxu0 0.0
      %646 = vmatpush1.msra.mxu0 %v631
      %647 = vmatprep.subr.mxu0 0.0
      %648 = vmatpush1.msra.mxu0 %v630
      %649 = vmatprep.subr.mxu0 0.0
      %650 = vmatpush1.msra.mxu0 %v629
      %651 = vmatprep.subr.mxu0 0.0
      %652 = vmatpush1.msra.mxu0 %v628
      %653 = vmatprep.subr.mxu0 0.0
      %654 = vmatpush1.msra.mxu0 %v627
      %655 = vmatprep.subr.mxu0 0.0
      %656 = vmatpush1.msra.mxu0 %v626
      %657 = vmatprep.subr.mxu0 0.0
      %658 = vmatpush1.msra.mxu0 %v625
      %659 = vmatprep.subr.mxu0 0.0
      %660 = vmatpush1.msra.mxu0 %v624
      %661 = vmatprep.subr.mxu0 0.0
      %662 = vmatpush1.msra.mxu0 %v623
      %663 = vmatprep.subr.mxu0 0.0
      %664 = vmatpush1.msra.mxu0 %v622
      %665 = vmatprep.subr.mxu0 0.0
      %666 = vmatpush1.msra.mxu0 %v621
      %667 = vmatprep.subr.mxu0 0.0
      %668 = vmatpush1.msra.mxu0 %v620
      %669 = vmatprep.subr.mxu0 0.0
      %670 = vmatpush2.msra.mxu0 0.0
      %671 = vmatprep.subr.mxu0 0.0
      %672 = vmatpush2.msra.mxu0 0.0
      %673 = vmatprep.subr.mxu0 0.0
      %674 = vmatpush2.msra.mxu0 0.0
      %675 = vmatprep.subr.mxu0 0.0
      %676 = vmatpush2.msra.mxu0 0.0
      %677 = vmatprep.subr.mxu0 0.0
      %678 = vmatpush2.msra.mxu0 0.0
      %679 = vmatprep.subr.mxu0 0.0
      %680 = vmatpush2.msra.mxu0 0.0
      %681 = vmatprep.subr.mxu0 0.0
      %682 = vmatpush2.msra.mxu0 0.0
      %683 = vmatprep.subr.mxu0 0.0
      %684 = vmatpush2.msra.mxu0 0.0
      %685 = vmatprep.subr.mxu0 0.0
      %686 = vmatpush2.msra.mxu0 0.0
      %687 = vmatprep.subr.mxu0 0.0
      %688 = vmatpush2.msra.mxu0 0.0
      %689 = vmatprep.subr.mxu0 0.0
      %690 = vmatpush2.msra.mxu0 0.0
      %691 = vmatprep.subr.mxu0 0.0
      %692 = vmatpush2.msra.mxu0 0.0
      %693 = vmatprep.subr.mxu0 0.0
      %694 = vmatpush2.msra.mxu0 0.0
      %695 = vmatprep.subr.mxu0 0.0
      %696 = vmatpush2.msra.mxu0 0.0
      %697 = vmatprep.subr.mxu0 0.0
      %698 = vmatpush2.msra.mxu0 0.0
      %699 = vmatprep.subr.mxu0 0.0
      %700 = vmatpush2.msra.mxu0 0.0
      %701 = vmatprep.mubr.f32.mxu0 0.0
      %702 = vmatmul.mubr.f32.gmra.mxu0 %v619
      %v703 = vpop.f32.mrf.mxu0
      %v704 = vadd.f32 %v636, %v703
      %v705 = vpop.f32.mrf.mxu0
      %706 = vdwg.mxu0
      %vm707 = vcmp.gt.f32.partialorder %v704, 0.0
      %v708 = vmul.f32 %v704, 0.01
      %v709 = vsel %vm707, %v704, %v708
      %v710 = vld [vmem:[#allocation11] sm:$0xff]
      %v711 = vld [vmem:[#allocation11 + $0x8] sm:$0xff]
      %v712 = vld [vmem:[#allocation11 + $0x10] sm:$0xff]
      %v713 = vld [vmem:[#allocation11 + $0x18] sm:$0xff]
      %v714 = vld [vmem:[#allocation11 + $0x20] sm:$0xff]
      %v715 = vld [vmem:[#allocation11 + $0x28] sm:$0xff]
      %v716 = vld [vmem:[#allocation11 + $0x30] sm:$0xff]
      %v717 = vld [vmem:[#allocation11 + $0x38] sm:$0xff]
      %v718 = vld [vmem:[#allocation11 + $0x40] sm:$0xff]
      %v719 = vld [vmem:[#allocation11 + $0x48] sm:$0xff]
      %v720 = vld [vmem:[#allocation11 + $0x50] sm:$0xff]
      %v721 = vld [vmem:[#allocation11 + $0x58] sm:$0xff]
      %v722 = vld [vmem:[#allocation11 + $0x60] sm:$0xff]
      %v723 = vld [vmem:[#allocation11 + $0x68] sm:$0xff]
      %v724 = vld [vmem:[#allocation11 + $0x70] sm:$0xff]
      %v725 = vld [vmem:[#allocation11 + $0x78] sm:$0xff]
      %v726 = vld [vmem:[%s10] sm:$0x1]
      %v728 = vlaneseq
      %v729 = vshrl.u32 %v728, 7
      %v730 = vsub.s32 0, %v729
      %v731 = vrot.slane %v726, %v730
      %733 = vmatprep.subr.mxu0 0.0
      %734 = vmatpush1.msra.mxu0 %v725
      %735 = vmatprep.subr.mxu0 0.0
      %736 = vmatpush1.msra.mxu0 %v724
      %737 = vmatprep.subr.mxu0 0.0
      %738 = vmatpush1.msra.mxu0 %v723
      %739 = vmatprep.subr.mxu0 0.0
      %740 = vmatpush1.msra.mxu0 %v722
      %741 = vmatprep.subr.mxu0 0.0
      %742 = vmatpush1.msra.mxu0 %v721
      %743 = vmatprep.subr.mxu0 0.0
      %744 = vmatpush1.msra.mxu0 %v720
      %745 = vmatprep.subr.mxu0 0.0
      %746 = vmatpush1.msra.mxu0 %v719
      %747 = vmatprep.subr.mxu0 0.0
      %748 = vmatpush1.msra.mxu0 %v718
      %749 = vmatprep.subr.mxu0 0.0
      %750 = vmatpush1.msra.mxu0 %v717
      %751 = vmatprep.subr.mxu0 0.0
      %752 = vmatpush1.msra.mxu0 %v716
      %753 = vmatprep.subr.mxu0 0.0
      %754 = vmatpush1.msra.mxu0 %v715
      %755 = vmatprep.subr.mxu0 0.0
      %756 = vmatpush1.msra.mxu0 %v714
      %757 = vmatprep.subr.mxu0 0.0
      %758 = vmatpush1.msra.mxu0 %v713
      %759 = vmatprep.subr.mxu0 0.0
      %760 = vmatpush1.msra.mxu0 %v712
      %761 = vmatprep.subr.mxu0 0.0
      %762 = vmatpush1.msra.mxu0 %v711
      %763 = vmatprep.subr.mxu0 0.0
      %764 = vmatpush1.msra.mxu0 %v710
      %765 = vmatprep.subr.mxu0 0.0
      %766 = vmatpush2.msra.mxu0 0.0
      %767 = vmatprep.subr.mxu0 0.0
      %768 = vmatpush2.msra.mxu0 0.0
      %769 = vmatprep.subr.mxu0 0.0
      %770 = vmatpush2.msra.mxu0 0.0
      %771 = vmatprep.subr.mxu0 0.0
      %772 = vmatpush2.msra.mxu0 0.0
      %773 = vmatprep.subr.mxu0 0.0
      %774 = vmatpush2.msra.mxu0 0.0
      %775 = vmatprep.subr.mxu0 0.0
      %776 = vmatpush2.msra.mxu0 0.0
      %777 = vmatprep.subr.mxu0 0.0
      %778 = vmatpush2.msra.mxu0 0.0
      %779 = vmatprep.subr.mxu0 0.0
      %780 = vmatpush2.msra.mxu0 0.0
      %781 = vmatprep.subr.mxu0 0.0
      %782 = vmatpush2.msra.mxu0 0.0
      %783 = vmatprep.subr.mxu0 0.0
      %784 = vmatpush2.msra.mxu0 0.0
      %785 = vmatprep.subr.mxu0 0.0
      %786 = vmatpush2.msra.mxu0 0.0
      %787 = vmatprep.subr.mxu0 0.0
      %788 = vmatpush2.msra.mxu0 0.0
      %789 = vmatprep.subr.mxu0 0.0
      %790 = vmatpush2.msra.mxu0 0.0
      %791 = vmatprep.subr.mxu0 0.0
      %792 = vmatpush2.msra.mxu0 0.0
      %793 = vmatprep.subr.mxu0 0.0
      %794 = vmatpush2.msra.mxu0 0.0
      %795 = vmatprep.subr.mxu0 0.0
      %796 = vmatpush2.msra.mxu0 0.0
      %797 = vmatprep.mubr.f32.mxu0 0.0
      %798 = vmatmul.mubr.f32.gmra.mxu0 %v709
      %v799 = vpop.f32.mrf.mxu0
      %v800 = vadd.f32 %v731, %v799
      %v801 = vpop.f32.mrf.mxu0
      %802 = vdwg.mxu0
      %vm803 = vcmp.gt.f32.partialorder %v800, 0.0
      %v804 = vmul.f32 %v800, 0.01
      %v805 = vsel %vm803, %v800, %v804
      %v806 = vld [vmem:[#allocation12] sm:$0xff]
      %v807 = vld [vmem:[#allocation12 + $0x8] sm:$0xff]
      %v808 = vld [vmem:[#allocation12 + $0x10] sm:$0xff]
      %v809 = vld [vmem:[#allocation12 + $0x18] sm:$0xff]
      %v810 = vld [vmem:[#allocation12 + $0x20] sm:$0xff]
      %v811 = vld [vmem:[#allocation12 + $0x28] sm:$0xff]
      %v812 = vld [vmem:[#allocation12 + $0x30] sm:$0xff]
      %v813 = vld [vmem:[#allocation12 + $0x38] sm:$0xff]
      %v814 = vld [vmem:[#allocation12 + $0x40] sm:$0xff]
      %v815 = vld [vmem:[#allocation12 + $0x48] sm:$0xff]
      %v816 = vld [vmem:[#allocation12 + $0x50] sm:$0xff]
      %v817 = vld [vmem:[#allocation12 + $0x58] sm:$0xff]
      %v818 = vld [vmem:[#allocation12 + $0x60] sm:$0xff]
      %v819 = vld [vmem:[#allocation12 + $0x68] sm:$0xff]
      %v820 = vld [vmem:[#allocation12 + $0x70] sm:$0xff]
      %v821 = vld [vmem:[#allocation12 + $0x78] sm:$0xff]
      %v822 = vld [vmem:[%s12] sm:$0x1]
      %v824 = vlaneseq
      %v825 = vshrl.u32 %v824, 7
      %v826 = vsub.s32 0, %v825
      %v827 = vrot.slane %v822, %v826
      %829 = vmatprep.subr.mxu0 0.0
      %830 = vmatpush1.msra.mxu0 %v821
      %831 = vmatprep.subr.mxu0 0.0
      %832 = vmatpush1.msra.mxu0 %v820
      %833 = vmatprep.subr.mxu0 0.0
      %834 = vmatpush1.msra.mxu0 %v819
      %835 = vmatprep.subr.mxu0 0.0
      %836 = vmatpush1.msra.mxu0 %v818
      %837 = vmatprep.subr.mxu0 0.0
      %838 = vmatpush1.msra.mxu0 %v817
      %839 = vmatprep.subr.mxu0 0.0
      %840 = vmatpush1.msra.mxu0 %v816
      %841 = vmatprep.subr.mxu0 0.0
      %842 = vmatpush1.msra.mxu0 %v815
      %843 = vmatprep.subr.mxu0 0.0
      %844 = vmatpush1.msra.mxu0 %v814
      %845 = vmatprep.subr.mxu0 0.0
      %846 = vmatpush1.msra.mxu0 %v813
      %847 = vmatprep.subr.mxu0 0.0
      %848 = vmatpush1.msra.mxu0 %v812
      %849 = vmatprep.subr.mxu0 0.0
      %850 = vmatpush1.msra.mxu0 %v811
      %851 = vmatprep.subr.mxu0 0.0
      %852 = vmatpush1.msra.mxu0 %v810
      %853 = vmatprep.subr.mxu0 0.0
      %854 = vmatpush1.msra.mxu0 %v809
      %855 = vmatprep.subr.mxu0 0.0
      %856 = vmatpush1.msra.mxu0 %v808
      %857 = vmatprep.subr.mxu0 0.0
      %858 = vmatpush1.msra.mxu0 %v807
      %859 = vmatprep.subr.mxu0 0.0
      %860 = vmatpush1.msra.mxu0 %v806
      %861 = vmatprep.subr.mxu0 0.0
      %862 = vmatpush2.msra.mxu0 0.0
      %863 = vmatprep.subr.mxu0 0.0
      %864 = vmatpush2.msra.mxu0 0.0
      %865 = vmatprep.subr.mxu0 0.0
      %866 = vmatpush2.msra.mxu0 0.0
      %867 = vmatprep.subr.mxu0 0.0
      %868 = vmatpush2.msra.mxu0 0.0
      %869 = vmatprep.subr.mxu0 0.0
      %870 = vmatpush2.msra.mxu0 0.0
      %871 = vmatprep.subr.mxu0 0.0
      %872 = vmatpush2.msra.mxu0 0.0
      %873 = vmatprep.subr.mxu0 0.0
      %874 = vmatpush2.msra.mxu0 0.0
      %875 = vmatprep.subr.mxu0 0.0
      %876 = vmatpush2.msra.mxu0 0.0
      %877 = vmatprep.subr.mxu0 0.0
      %878 = vmatpush2.msra.mxu0 0.0
      %879 = vmatprep.subr.mxu0 0.0
      %880 = vmatpush2.msra.mxu0 0.0
      %881 = vmatprep.subr.mxu0 0.0
      %882 = vmatpush2.msra.mxu0 0.0
      %883 = vmatprep.subr.mxu0 0.0
      %884 = vmatpush2.msra.mxu0 0.0
      %885 = vmatprep.subr.mxu0 0.0
      %886 = vmatpush2.msra.mxu0 0.0
      %887 = vmatprep.subr.mxu0 0.0
      %888 = vmatpush2.msra.mxu0 0.0
      %889 = vmatprep.subr.mxu0 0.0
      %890 = vmatpush2.msra.mxu0 0.0
      %891 = vmatprep.subr.mxu0 0.0
      %892 = vmatpush2.msra.mxu0 0.0
      %893 = vmatprep.mubr.f32.mxu0 0.0
      %894 = vmatmul.mubr.f32.gmra.mxu0 %v805
      %v895 = vpop.f32.mrf.mxu0
      %v896 = vadd.f32 %v827, %v895
      %v897 = vpop.f32.mrf.mxu0
      %898 = vdwg.mxu0
      %vm899 = vcmp.gt.f32.partialorder %v896, 0.0
      %v900 = vmul.f32 %v896, 0.01
      %v901 = vsel %vm899, %v896, %v900
      %v902 = vld [vmem:[#allocation14] sm:$0xff]
      %v903 = vld [vmem:[#allocation14 + $0x8] sm:$0xff]
      %v904 = vld [vmem:[#allocation14 + $0x10] sm:$0xff]
      %v905 = vld [vmem:[#allocation14 + $0x18] sm:$0xff]
      %v906 = vld [vmem:[#allocation14 + $0x20] sm:$0xff]
      %v907 = vld [vmem:[#allocation14 + $0x28] sm:$0xff]
      %v908 = vld [vmem:[#allocation14 + $0x30] sm:$0xff]
      %v909 = vld [vmem:[#allocation14 + $0x38] sm:$0xff]
      %v910 = vld [vmem:[#allocation14 + $0x40] sm:$0xff]
      %v911 = vld [vmem:[#allocation14 + $0x48] sm:$0xff]
      %v912 = vld [vmem:[#allocation14 + $0x50] sm:$0xff]
      %v913 = vld [vmem:[#allocation14 + $0x58] sm:$0xff]
      %v914 = vld [vmem:[#allocation14 + $0x60] sm:$0xff]
      %v915 = vld [vmem:[#allocation14 + $0x68] sm:$0xff]
      %v916 = vld [vmem:[#allocation14 + $0x70] sm:$0xff]
      %v917 = vld [vmem:[#allocation14 + $0x78] sm:$0xff]
      %v918 = vld [vmem:[%s14] sm:$0x1]
      %v920 = vlaneseq
      %v921 = vshrl.u32 %v920, 7
      %v922 = vsub.s32 0, %v921
      %v923 = vrot.slane %v918, %v922
      %925 = vmatprep.subr.mxu0 0.0
      %926 = vmatpush1.msra.mxu0 %v917
      %927 = vmatprep.subr.mxu0 0.0
      %928 = vmatpush1.msra.mxu0 %v916
      %929 = vmatprep.subr.mxu0 0.0
      %930 = vmatpush1.msra.mxu0 %v915
      %931 = vmatprep.subr.mxu0 0.0
      %932 = vmatpush1.msra.mxu0 %v914
      %933 = vmatprep.subr.mxu0 0.0
      %934 = vmatpush1.msra.mxu0 %v913
      %935 = vmatprep.subr.mxu0 0.0
      %936 = vmatpush1.msra.mxu0 %v912
      %937 = vmatprep.subr.mxu0 0.0
      %938 = vmatpush1.msra.mxu0 %v911
      %939 = vmatprep.subr.mxu0 0.0
      %940 = vmatpush1.msra.mxu0 %v910
      %941 = vmatprep.subr.mxu0 0.0
      %942 = vmatpush1.msra.mxu0 %v909
      %943 = vmatprep.subr.mxu0 0.0
      %944 = vmatpush1.msra.mxu0 %v908
      %945 = vmatprep.subr.mxu0 0.0
      %946 = vmatpush1.msra.mxu0 %v907
      %947 = vmatprep.subr.mxu0 0.0
      %948 = vmatpush1.msra.mxu0 %v906
      %949 = vmatprep.subr.mxu0 0.0
      %950 = vmatpush1.msra.mxu0 %v905
      %951 = vmatprep.subr.mxu0 0.0
      %952 = vmatpush1.msra.mxu0 %v904
      %953 = vmatprep.subr.mxu0 0.0
      %954 = vmatpush1.msra.mxu0 %v903
      %955 = vmatprep.subr.mxu0 0.0
      %956 = vmatpush1.msra.mxu0 %v902
      %957 = vmatprep.subr.mxu0 0.0
      %958 = vmatpush2.msra.mxu0 0.0
      %959 = vmatprep.subr.mxu0 0.0
      %960 = vmatpush2.msra.mxu0 0.0
      %961 = vmatprep.subr.mxu0 0.0
      %962 = vmatpush2.msra.mxu0 0.0
      %963 = vmatprep.subr.mxu0 0.0
      %964 = vmatpush2.msra.mxu0 0.0
      %965 = vmatprep.subr.mxu0 0.0
      %966 = vmatpush2.msra.mxu0 0.0
      %967 = vmatprep.subr.mxu0 0.0
      %968 = vmatpush2.msra.mxu0 0.0
      %969 = vmatprep.subr.mxu0 0.0
      %970 = vmatpush2.msra.mxu0 0.0
      %971 = vmatprep.subr.mxu0 0.0
      %972 = vmatpush2.msra.mxu0 0.0
      %973 = vmatprep.subr.mxu0 0.0
      %974 = vmatpush2.msra.mxu0 0.0
      %975 = vmatprep.subr.mxu0 0.0
      %976 = vmatpush2.msra.mxu0 0.0
      %977 = vmatprep.subr.mxu0 0.0
      %978 = vmatpush2.msra.mxu0 0.0
      %979 = vmatprep.subr.mxu0 0.0
      %980 = vmatpush2.msra.mxu0 0.0
      %981 = vmatprep.subr.mxu0 0.0
      %982 = vmatpush2.msra.mxu0 0.0
      %983 = vmatprep.subr.mxu0 0.0
      %984 = vmatpush2.msra.mxu0 0.0
      %985 = vmatprep.subr.mxu0 0.0
      %986 = vmatpush2.msra.mxu0 0.0
      %987 = vmatprep.subr.mxu0 0.0
      %988 = vmatpush2.msra.mxu0 0.0
      %989 = vmatprep.mubr.f32.mxu0 0.0
      %990 = vmatmul.mubr.f32.gmra.mxu0 %v901
      %v991 = vpop.f32.mrf.mxu0
      %v992 = vadd.f32 %v923, %v991
      %v993 = vpop.f32.mrf.mxu0
      %994 = vdwg.mxu0
      %vm995 = vcmp.gt.f32.partialorder %v992, 0.0
      %v996 = vmul.f32 %v992, 0.01
      %v997 = vsel %vm995, %v992, %v996
      %v998 = vld [vmem:[#allocation15] sm:$0xff]
      %v999 = vld [vmem:[#allocation15 + $0x8] sm:$0xff]
      %v1000 = vld [vmem:[#allocation15 + $0x10] sm:$0xff]
      %v1001 = vld [vmem:[#allocation15 + $0x18] sm:$0xff]
      %v1002 = vld [vmem:[#allocation15 + $0x20] sm:$0xff]
      %v1003 = vld [vmem:[#allocation15 + $0x28] sm:$0xff]
      %v1004 = vld [vmem:[#allocation15 + $0x30] sm:$0xff]
      %v1005 = vld [vmem:[#allocation15 + $0x38] sm:$0xff]
      %v1006 = vld [vmem:[#allocation15 + $0x40] sm:$0xff]
      %v1007 = vld [vmem:[#allocation15 + $0x48] sm:$0xff]
      %v1008 = vld [vmem:[#allocation15 + $0x50] sm:$0xff]
      %v1009 = vld [vmem:[#allocation15 + $0x58] sm:$0xff]
      %v1010 = vld [vmem:[#allocation15 + $0x60] sm:$0xff]
      %v1011 = vld [vmem:[#allocation15 + $0x68] sm:$0xff]
      %v1012 = vld [vmem:[#allocation15 + $0x70] sm:$0xff]
      %v1013 = vld [vmem:[#allocation15 + $0x78] sm:$0xff]
      %v1014 = vld [vmem:[%s16] sm:$0x1]
      %v1016 = vlaneseq
      %v1017 = vshrl.u32 %v1016, 7
      %v1018 = vsub.s32 0, %v1017
      %v1019 = vrot.slane %v1014, %v1018
      %1021 = vmatprep.subr.mxu0 0.0
      %1022 = vmatpush1.msra.mxu0 %v1013
      %1023 = vmatprep.subr.mxu0 0.0
      %1024 = vmatpush1.msra.mxu0 %v1012
      %1025 = vmatprep.subr.mxu0 0.0
      %1026 = vmatpush1.msra.mxu0 %v1011
      %1027 = vmatprep.subr.mxu0 0.0
      %1028 = vmatpush1.msra.mxu0 %v1010
      %1029 = vmatprep.subr.mxu0 0.0
      %1030 = vmatpush1.msra.mxu0 %v1009
      %1031 = vmatprep.subr.mxu0 0.0
      %1032 = vmatpush1.msra.mxu0 %v1008
      %1033 = vmatprep.subr.mxu0 0.0
      %1034 = vmatpush1.msra.mxu0 %v1007
      %1035 = vmatprep.subr.mxu0 0.0
      %1036 = vmatpush1.msra.mxu0 %v1006
      %1037 = vmatprep.subr.mxu0 0.0
      %1038 = vmatpush1.msra.mxu0 %v1005
      %1039 = vmatprep.subr.mxu0 0.0
      %1040 = vmatpush1.msra.mxu0 %v1004
      %1041 = vmatprep.subr.mxu0 0.0
      %1042 = vmatpush1.msra.mxu0 %v1003
      %1043 = vmatprep.subr.mxu0 0.0
      %1044 = vmatpush1.msra.mxu0 %v1002
      %1045 = vmatprep.subr.mxu0 0.0
      %1046 = vmatpush1.msra.mxu0 %v1001
      %1047 = vmatprep.subr.mxu0 0.0
      %1048 = vmatpush1.msra.mxu0 %v1000
      %1049 = vmatprep.subr.mxu0 0.0
      %1050 = vmatpush1.msra.mxu0 %v999
      %1051 = vmatprep.subr.mxu0 0.0
      %1052 = vmatpush1.msra.mxu0 %v998
      %1053 = vmatprep.subr.mxu0 0.0
      %1054 = vmatpush2.msra.mxu0 0.0
      %1055 = vmatprep.subr.mxu0 0.0
      %1056 = vmatpush2.msra.mxu0 0.0
      %1057 = vmatprep.subr.mxu0 0.0
      %1058 = vmatpush2.msra.mxu0 0.0
      %1059 = vmatprep.subr.mxu0 0.0
      %1060 = vmatpush2.msra.mxu0 0.0
      %1061 = vmatprep.subr.mxu0 0.0
      %1062 = vmatpush2.msra.mxu0 0.0
      %1063 = vmatprep.subr.mxu0 0.0
      %1064 = vmatpush2.msra.mxu0 0.0
      %1065 = vmatprep.subr.mxu0 0.0
      %1066 = vmatpush2.msra.mxu0 0.0
      %1067 = vmatprep.subr.mxu0 0.0
      %1068 = vmatpush2.msra.mxu0 0.0
      %1069 = vmatprep.subr.mxu0 0.0
      %1070 = vmatpush2.msra.mxu0 0.0
      %1071 = vmatprep.subr.mxu0 0.0
      %1072 = vmatpush2.msra.mxu0 0.0
      %1073 = vmatprep.subr.mxu0 0.0
      %1074 = vmatpush2.msra.mxu0 0.0
      %1075 = vmatprep.subr.mxu0 0.0
      %1076 = vmatpush2.msra.mxu0 0.0
      %1077 = vmatprep.subr.mxu0 0.0
      %1078 = vmatpush2.msra.mxu0 0.0
      %1079 = vmatprep.subr.mxu0 0.0
      %1080 = vmatpush2.msra.mxu0 0.0
      %1081 = vmatprep.subr.mxu0 0.0
      %1082 = vmatpush2.msra.mxu0 0.0
      %1083 = vmatprep.subr.mxu0 0.0
      %1084 = vmatpush2.msra.mxu0 0.0
      %1085 = vmatprep.mubr.f32.mxu0 0.0
      %1086 = vmatmul.mubr.f32.gmra.mxu0 %v997
      %v1087 = vpop.f32.mrf.mxu0
      %v1088 = vadd.f32 %v1019, %v1087
      %v1089 = vpop.f32.mrf.mxu0
      %1090 = vdwg.mxu0
      %vm1091 = vcmp.gt.f32.partialorder %v1088, 0.0
      %v1092 = vmul.f32 %v1088, 0.01
      %v1093 = vsel %vm1091, %v1088, %v1092
      %v1094 = vld [vmem:[%s17] sm:$0xff]
      %v1095 = vld [vmem:[%s17 + $0x8] sm:$0xff]
      %v1096 = vld [vmem:[%s17 + $0x10] sm:$0xff]
      %v1097 = vld [vmem:[%s17 + $0x18] sm:$0xff]
      %v1098 = vld [vmem:[%s17 + $0x20] sm:$0xff]
      %v1099 = vld [vmem:[%s17 + $0x28] sm:$0xff]
      %v1100 = vld [vmem:[%s17 + $0x30] sm:$0xff]
      %v1101 = vld [vmem:[%s17 + $0x38] sm:$0xff]
      %v1102 = vld [vmem:[%s17 + $0x40] sm:$0xff]
      %v1103 = vld [vmem:[%s17 + $0x48] sm:$0xff]
      %v1104 = vld [vmem:[%s17 + $0x50] sm:$0xff]
      %v1105 = vld [vmem:[%s17 + $0x58] sm:$0xff]
      %v1106 = vld [vmem:[%s17 + $0x60] sm:$0xff]
      %v1107 = vld [vmem:[%s17 + $0x68] sm:$0xff]
      %v1108 = vld [vmem:[%s17 + $0x70] sm:$0xff]
      %v1109 = vld [vmem:[%s17 + $0x78] sm:$0xff]
      %v1110 = vld [vmem:[#allocation3] sm:$0x1]
      %v1112 = vlaneseq
      %v1113 = vshrl.u32 %v1112, 7
      %v1114 = vsub.s32 0, %v1113
      %v1115 = vrot.slane %v1110, %v1114
      %1117 = vmatprep.subr.mxu0 0.0
      %1118 = vmatpush1.msra.mxu0 %v1109
      %1119 = vmatprep.subr.mxu0 0.0
      %1120 = vmatpush1.msra.mxu0 %v1108
      %1121 = vmatprep.subr.mxu0 0.0
      %1122 = vmatpush1.msra.mxu0 %v1107
      %1123 = vmatprep.subr.mxu0 0.0
      %1124 = vmatpush1.msra.mxu0 %v1106
      %1125 = vmatprep.subr.mxu0 0.0
      %1126 = vmatpush1.msra.mxu0 %v1105
      %1127 = vmatprep.subr.mxu0 0.0
      %1128 = vmatpush1.msra.mxu0 %v1104
      %1129 = vmatprep.subr.mxu0 0.0
      %1130 = vmatpush1.msra.mxu0 %v1103
      %1131 = vmatprep.subr.mxu0 0.0
      %1132 = vmatpush1.msra.mxu0 %v1102
      %1133 = vmatprep.subr.mxu0 0.0
      %1134 = vmatpush1.msra.mxu0 %v1101
      %1135 = vmatprep.subr.mxu0 0.0
      %1136 = vmatpush1.msra.mxu0 %v1100
      %1137 = vmatprep.subr.mxu0 0.0
      %1138 = vmatpush1.msra.mxu0 %v1099
      %1139 = vmatprep.subr.mxu0 0.0
      %1140 = vmatpush1.msra.mxu0 %v1098
      %1141 = vmatprep.subr.mxu0 0.0
      %1142 = vmatpush1.msra.mxu0 %v1097
      %1143 = vmatprep.subr.mxu0 0.0
      %1144 = vmatpush1.msra.mxu0 %v1096
      %1145 = vmatprep.subr.mxu0 0.0
      %1146 = vmatpush1.msra.mxu0 %v1095
      %1147 = vmatprep.subr.mxu0 0.0
      %1148 = vmatpush1.msra.mxu0 %v1094
      %1149 = vmatprep.subr.mxu0 0.0
      %1150 = vmatpush2.msra.mxu0 0.0
      %1151 = vmatprep.subr.mxu0 0.0
      %1152 = vmatpush2.msra.mxu0 0.0
      %1153 = vmatprep.subr.mxu0 0.0
      %1154 = vmatpush2.msra.mxu0 0.0
      %1155 = vmatprep.subr.mxu0 0.0
      %1156 = vmatpush2.msra.mxu0 0.0
      %1157 = vmatprep.subr.mxu0 0.0
      %1158 = vmatpush2.msra.mxu0 0.0
      %1159 = vmatprep.subr.mxu0 0.0
      %1160 = vmatpush2.msra.mxu0 0.0
      %1161 = vmatprep.subr.mxu0 0.0
      %1162 = vmatpush2.msra.mxu0 0.0
      %1163 = vmatprep.subr.mxu0 0.0
      %1164 = vmatpush2.msra.mxu0 0.0
      %1165 = vmatprep.subr.mxu0 0.0
      %1166 = vmatpush2.msra.mxu0 0.0
      %1167 = vmatprep.subr.mxu0 0.0
      %1168 = vmatpush2.msra.mxu0 0.0
      %1169 = vmatprep.subr.mxu0 0.0
      %1170 = vmatpush2.msra.mxu0 0.0
      %1171 = vmatprep.subr.mxu0 0.0
      %1172 = vmatpush2.msra.mxu0 0.0
      %1173 = vmatprep.subr.mxu0 0.0
      %1174 = vmatpush2.msra.mxu0 0.0
      %1175 = vmatprep.subr.mxu0 0.0
      %1176 = vmatpush2.msra.mxu0 0.0
      %1177 = vmatprep.subr.mxu0 0.0
      %1178 = vmatpush2.msra.mxu0 0.0
      %1179 = vmatprep.subr.mxu0 0.0
      %1180 = vmatpush2.msra.mxu0 0.0
      %1181 = vmatprep.mubr.f32.mxu0 0.0
      %1182 = vmatmul.mubr.f32.gmra.mxu0 %v1093
      %v1183 = vpop.f32.mrf.mxu0
      %v1184 = vadd.f32 %v1115, %v1183
      %v1185 = vpop.f32.mrf.mxu0
      %1186 = vdwg.mxu0
      %v1187 = vmul.f32 %v1184, 5.0
      %vm1188 = vcmask 1024
      %1189 = vst.msk [vmem:[%s19] sm:$0x3] %vm1188, %v1187
    $region117: #{tpu_custom_call.1} parent=1 // pred_fallthru
      _
    // Predicated region
    $region118: #{tpu_custom_call.1} parent=1 // pred_check
      _
    $region119: #{tpu_custom_call.1} parent=1 // pred_check_branch
      %1191 = sbr.rel (0) target = $region121
    $region120: #{tpu_custom_call.1} parent=1 // pred_region
      _
    $region121: #{tpu_custom_call.1} parent=1 // pred_fallthru
      _
    // Predicated region
    $region122: #{tpu_custom_call.1} parent=1 // pred_check
      _
    $region123: #{tpu_custom_call.1} parent=1 // pred_check_branch
      %1193 = sbr.rel (0) target = $region125
    $region124: #{tpu_custom_call.1} parent=1 // pred_region
      _
    $region125: #{tpu_custom_call.1} parent=1 // pred_fallthru
      _
    %1194 = vsyncpa [#allocation5], 1
    %1195 = vsyncpa [#allocation7], 1
    %1196 = vsyncpa [#allocation10], 1
    %1197 = vsyncpa [#allocation13], 1
    %1198 = vsyncpa [#allocation16], 1

</llo_original>
